<compile_context>
chip_gen: v7x
topology: tpu7x:2x2x1
jax: 0.10.0
libtpu: 0.0.40
codegen_flags: <defaults>
</compile_context>

<pallas_src>
import jax
import jax.numpy as jnp
from jax.experimental import pallas as pl
from jax.experimental.pallas import tpu as pltpu


# ----------------------------------------------------------------------------
# One-time parameter preparation (fused gate-major layout + optional bf16 cast)
# ----------------------------------------------------------------------------
def prepare_gru_params(params, *, mxu_bf16=True):
    """params: w_ih, w_hh: (L, 3, D, D)  (gate order r, z, n; laid out so x @ w[g])
               b_ih, b_hh: (L, 3, 1, D)
    returns dict with:
      wih_cat, whh_cat: (L, D, 3D)  in MXU operand dtype
      bif:              (L, 1, 3D)  f32   (b_ih+b_hh for r,z ; b_ih for n)
      bhn:              (L, 1, D)   f32   (b_hh of n gate, stays inside r*( ))
    """
    w_ih, w_hh = params["w_ih"], params["w_hh"]
    b_ih, b_hh = params["b_ih"], params["b_hh"]
    L, _, D, _ = w_ih.shape
    cdt = jnp.bfloat16 if mxu_bf16 else jnp.float32
    wih_cat = jnp.transpose(w_ih, (0, 2, 1, 3)).reshape(L, D, 3 * D).astype(cdt)
    whh_cat = jnp.transpose(w_hh, (0, 2, 1, 3)).reshape(L, D, 3 * D).astype(cdt)
    bif = jnp.concatenate(
        [b_ih[:, 0] + b_hh[:, 0], b_ih[:, 1] + b_hh[:, 1], b_ih[:, 2]], axis=-1)
    bhn = b_hh[:, 2]
    return {"wih_cat": wih_cat, "whh_cat": whh_cat, "bif": bif, "bhn": bhn,
            "mxu_bf16": mxu_bf16}


# ----------------------------------------------------------------------------
# Pallas kernel + wrapper: multi-layer GRU, returns mean over layers of the
# final hidden state:  (T, N, D) time-major input  ->  (N, D)
# ----------------------------------------------------------------------------
def gru_hidden_mean(a_tm, h0, prep, *, tn=None):
    T, N, D = a_tm.shape
    L = h0.shape[0]
    mxu_bf16 = prep["mxu_bf16"]
    cdt = jnp.bfloat16 if mxu_bf16 else jnp.float32   # MXU operand / seq dtype
    G3 = 3 * D

    if tn is None:
        # NOTE: on v7x pass tn <= N/2 (multiple of 8) so both TensorCores get
        # work; on v5e/v6e (1 TC) keep tn as large as VMEM allows.
        tn = N
    assert N % tn == 0 and tn % 8 == 0, (N, tn)
    n_tiles = N // tn

    # Tile-major input layout: (n_tiles, T*tn, D) -- one contiguous slab per
    # N-tile so the auto-pipeline prefetches tile n+1 while tile n computes.
    a_tiled = (a_tm.reshape(T, n_tiles, tn, D)
                   .transpose(1, 0, 2, 3)
                   .reshape(n_tiles, T * tn, D)
                   .astype(cdt))

    def kernel(a_ref, h0_ref, wih_hbm, whh_hbm, bif_hbm, bhn_hbm,
               out_ref, seq_ref, gi_ref, acc_ref,
               wih_vmem, whh_vmem, bif_vmem, bhn_vmem, dma_sem):
        layer = pl.program_id(1)

        # ---- layer 0 of each N-tile: pull the (small) fused weights for ALL
        # layers into persistent VMEM, and run the hoisted x @ W_ih GEMM
        # straight off the auto-pipelined input block.  W_hh / b_hh_n DMAs
        # overlap the x-GEMM.
        @pl.when(layer == 0)
        def _():
            cp_wih = pltpu.make_async_copy(wih_hbm, wih_vmem, dma_sem.at[0])
            cp_whh = pltpu.make_async_copy(whh_hbm, whh_vmem, dma_sem.at[1])
            cp_bif = pltpu.make_async_copy(bif_hbm, bif_vmem, dma_sem.at[2])
            cp_bhn = pltpu.make_async_copy(bhn_hbm, bhn_vmem, dma_sem.at[3])
            cp_wih.start(); cp_bif.start(); cp_whh.start(); cp_bhn.start()
            cp_wih.wait(); cp_bif.wait()
            gi_ref[...] = (
                jnp.dot(a_ref[0], wih_vmem[0],
                        preferred_element_type=jnp.float32)
                + bif_vmem[0])
            cp_whh.wait(); cp_bhn.wait()

        # ---- layers > 0: same hoisted GEMM, input is the previous layer's
        # output sequence kept in VMEM (never round-tripped through HBM).
        if L > 1:
            @pl.when(layer > 0)
            def _():
                gi_ref[...] = (
                    jnp.dot(seq_ref[...], wih_vmem[layer],
                            preferred_element_type=jnp.float32)
                    + bif_vmem[layer])

        # ---- per-layer constants (hoisted out of the time loop) ----
        whh_l = whh_vmem[layer]                               # (D, 3D)
        bhh_n = jnp.broadcast_to(bhn_vmem[layer], (tn, D))    # (tn, D) f32
        h = h0_ref[0]                                         # (tn, D) f32

        # ---- serial recurrence: T is small & static -> fully unrolled Python
        # loop, h carried as a register value, static pl.ds offsets only.
        for t in range(T):
            row = t * tn
            gi_t = gi_ref[pl.ds(row, tn), :]                  # (tn, 3D) f32
            gh = jnp.dot(h.astype(cdt), whh_l,
                         preferred_element_type=jnp.float32)  # (tn, 3D) f32
            rz = jax.nn.sigmoid(gi_t[:, :2 * D] + gh[:, :2 * D])
            r = rz[:, :D]
            z = rz[:, D:]
            n = jnp.tanh(gi_t[:, 2 * D:] + r * (gh[:, 2 * D:] + bhh_n))
            h = (1.0 - z) * n + z * h
            if L > 1:
                h_new = h
                # Last layer's output sequence is never read: skip dead store.
                @pl.when(layer < L - 1)
                def _():
                    seq_ref[pl.ds(row, tn), :] = h_new.astype(cdt)

        # ---- cross-layer mean: accumulate in f32 scratch, single out store.
        @pl.when(layer == 0)
        def _():
            acc_ref[...] = h
        if L > 1:
            @pl.when(layer > 0)
            def _():
                acc_ref[...] += h

        @pl.when(layer == L - 1)
        def _():
            out_ref[...] = acc_ref[...] * (1.0 / L)

    grid_spec = pltpu.PrefetchScalarGridSpec(
        num_scalar_prefetch=0,
        grid=(n_tiles, L),                                    # (parallel, serial)
        in_specs=[
            pl.BlockSpec((1, T * tn, D), lambda n, l: (n, 0, 0)),   # a (pipelined)
            pl.BlockSpec((1, tn, D), lambda n, l: (l, n, 0)),       # h0
            pl.BlockSpec(memory_space=pl.ANY),                      # wih_cat (HBM)
            pl.BlockSpec(memory_space=pl.ANY),                      # whh_cat (HBM)
            pl.BlockSpec(memory_space=pl.ANY),                      # bif     (HBM)
            pl.BlockSpec(memory_space=pl.ANY),                      # bhn     (HBM)
        ],
        out_specs=pl.BlockSpec((tn, D), lambda n, l: (n, 0)),
        scratch_shapes=[
            pltpu.VMEM((T * tn, D), cdt),            # running layer-I/O sequence
            pltpu.VMEM((T * tn, G3), jnp.float32),   # hoisted x@W_ih pre-acts
            pltpu.VMEM((tn, D), jnp.float32),        # cross-layer mean accum
            pltpu.VMEM((L, D, G3), cdt),             # all layers' W_ih (fused)
            pltpu.VMEM((L, D, G3), cdt),             # all layers' W_hh (fused)
            pltpu.VMEM((L, 1, G3), jnp.float32),     # folded b_ih(+b_hh r,z)
            pltpu.VMEM((L, 1, D), jnp.float32),      # b_hh of n gate
            pltpu.SemaphoreType.DMA((4,)),           # weight-DMA semaphores
        ],
    )

    return pl.pallas_call(
        kernel,
        out_shape=jax.ShapeDtypeStruct((N, D), jnp.float32),
        grid_spec=grid_spec,
        compiler_params=pltpu.CompilerParams(
            dimension_semantics=("parallel", "arbitrary")),
    )(a_tiled, h0, prep["wih_cat"], prep["whh_cat"], prep["bif"], prep["bhn"])


# ----------------------------------------------------------------------------
# Decoder.forward wrapper (glue in plain JAX: reshapes / expand)
# ----------------------------------------------------------------------------
def decoder_forward(h, a, prep, *, tn=None):
    """h: (L, B, D), a: (B, S, T, D)  ->  (B, S, D)"""
    L, B, D = h.shape
    _, S, T, _ = a.shape
    N = B * S

    a_tm = jnp.transpose(a.reshape(N, T, D), (1, 0, 2))              # (T, N, D)
    h0 = jnp.broadcast_to(h[:, :, None, :], (L, B, S, D)).reshape(L, N, D)

    hmean = gru_hidden_mean(a_tm, h0, prep, tn=tn)                   # (N, D)
    return hmean.reshape(B, S, D)


# ----------------------------------------------------------------------------
# Pure-JAX f32 reference GRU (for verification)
# ----------------------------------------------------------------------------
def _gru_ref(a_tm, h0, w_ih, w_hh, b_ih, b_hh):
    T, N, D = a_tm.shape
    L = h0.shape[0]
    x = a_tm
    hfin = []
    for l in range(L):
        h = h0[l]
        outs = []
        for t in range(T):
            gi = [x[t] @ w_ih[l, g] + b_ih[l, g] for g in range(3)]
            gh = [h @ w_hh[l, g] + b_hh[l, g] for g in range(3)]
            r = jax.nn.sigmoid(gi[0] + gh[0])
            z = jax.nn.sigmoid(gi[1] + gh[1])
            n = jnp.tanh(gi[2] + r * gh[2])
            h = (1.0 - z) * n + z * h
            outs.append(h)
        x = jnp.stack(outs, axis=0)
        hfin.append(h)
    return jnp.stack(hfin, axis=0)


def decoder_forward_ref(h, a, params):
    L, B, D = h.shape
    _, S, T, _ = a.shape
    N = B * S
    a_tm = jnp.transpose(a.reshape(N, T, D), (1, 0, 2))
    h0 = jnp.broadcast_to(h[:, :, None, :], (L, B, S, D)).reshape(L, N, D)
    hfin = _gru_ref(a_tm, h0, params["w_ih"], params["w_hh"],
                    params["b_ih"], params["b_hh"])                  # (L, N, D)
    return hfin.reshape(L, B, S, D).transpose(1, 2, 0, 3).mean(axis=2)


# ----------------------------------------------------------------------------
# Deterministic parameter init (same fan-in init as torch.nn.GRU(n_dim, n_dim, L)).
# Gate-major layout, gate order (r, z, n):
#   w_ih[l, g] corresponds to torch weight_ih_l{l}[g*D:(g+1)*D, :].T  (D, D)
#   b_ih[l, g] corresponds to torch bias_ih_l{l}[g*D:(g+1)*D]         (1, D)
# ----------------------------------------------------------------------------
def init_gru_params(key, n_dim, layers):
    bound = 1.0 / float(n_dim) ** 0.5
    keys = jax.random.split(key, 4 * layers)
    w_ih, w_hh, b_ih, b_hh = [], [], [], []
    for l in range(layers):
        k0, k1, k2, k3 = keys[4 * l:4 * l + 4]
        w_ih.append(jax.random.uniform(k0, (3, n_dim, n_dim),
                                       jnp.float32, -bound, bound))
        w_hh.append(jax.random.uniform(k1, (3, n_dim, n_dim),
                                       jnp.float32, -bound, bound))
        b_ih.append(jax.random.uniform(k2, (3, 1, n_dim),
                                       jnp.float32, -bound, bound))
        b_hh.append(jax.random.uniform(k3, (3, 1, n_dim),
                                       jnp.float32, -bound, bound))
    return {
        "w_ih": jnp.stack(w_ih, axis=0),   # (L, 3, D, D)
        "w_hh": jnp.stack(w_hh, axis=0),   # (L, 3, D, D)
        "b_ih": jnp.stack(b_ih, axis=0),   # (L, 3, 1, D)
        "b_hh": jnp.stack(b_hh, axis=0),   # (L, 3, 1, D)
    }


if __name__ == "__main__":
    n_dim, layers = 32, 2
    B, S, T = 2, 4, 8

    key = jax.random.PRNGKey(0)
    k_h, k_a, k_p = jax.random.split(key, 3)

    h = jax.random.normal(k_h, (layers, B, n_dim), jnp.float32)
    a = jax.random.normal(k_a, (B, S, T, n_dim), jnp.float32)
    params = init_gru_params(k_p, n_dim, layers)

    ref = jax.block_until_ready(decoder_forward_ref(h, a, params))

    # 1) f32 MXU operands: structural correctness vs the f32 reference.
    prep_f32 = prepare_gru_params(params, mxu_bf16=False)
    out_f32 = jax.block_until_ready(decoder_forward(h, a, prep_f32))
    assert out_f32.shape == (B, S, n_dim), out_f32.shape
    assert jnp.allclose(out_f32, ref, rtol=1e-4, atol=1e-4), \
        float(jnp.max(jnp.abs(out_f32 - ref)))

    # 2) bf16 MXU operands (f32 accumulation + f32 elementwise): compare at a
    #    bf16-operand-level tolerance against the f32 reference.
    prep_bf16 = prepare_gru_params(params, mxu_bf16=True)
    out_bf16 = jax.block_until_ready(decoder_forward(h, a, prep_bf16))
    assert out_bf16.shape == (B, S, n_dim), out_bf16.shape
    assert jnp.allclose(out_bf16, ref, rtol=2e-2, atol=2e-2), \
        float(jnp.max(jnp.abs(out_bf16 - ref)))

    print("KERNEL_OK")
</pallas_src>

<mosaic_0001>
module attributes {stable_mosaic.version = 11 : i64} {
  func.func @kernel(%arg0: i32, %arg1: i32, %arg2: memref<1x64x32xf32, #tpu.memory_space<vmem>>, %arg3: memref<1x8x32xf32, #tpu.memory_space<vmem>>, %arg4: memref<2x32x96xf32, #tpu.memory_space<any>>, %arg5: memref<2x32x96xf32, #tpu.memory_space<any>>, %arg6: memref<2x1x96xf32, #tpu.memory_space<any>>, %arg7: memref<2x1x32xf32, #tpu.memory_space<any>>, %arg8: memref<8x32xf32, #tpu.memory_space<vmem>>, %arg9: memref<64x32xf32, #tpu.memory_space<vmem>>, %arg10: memref<64x96xf32, #tpu.memory_space<vmem>>, %arg11: memref<8x32xf32, #tpu.memory_space<vmem>>, %arg12: memref<2x32x96xf32, #tpu.memory_space<vmem>>, %arg13: memref<2x32x96xf32, #tpu.memory_space<vmem>>, %arg14: memref<2x1x96xf32, #tpu.memory_space<vmem>>, %arg15: memref<2x1x32xf32, #tpu.memory_space<vmem>>, %arg16: memref<4x!tpu.dma_semaphore, #tpu.memory_space<semaphore_mem>>) attributes {dimension_semantics = [#tpu.dimension_semantics<parallel>, #tpu.dimension_semantics<arbitrary>], iteration_bounds = array<i64: 1, 2>, scalar_prefetch = 0 : i64, scratch_operands = 8 : i64, tpu.core_type = #tpu.core_type<tc>, window_params = [{transform_indices = @transform_0, window_bounds = array<i64: 1, 64, 32>}, {transform_indices = @transform_1, window_bounds = array<i64: 1, 8, 32>}, {}, {}, {}, {}, {transform_indices = @transform_6, window_bounds = array<i64: 8, 32>}]} {
    %c0_i32 = arith.constant 0 : i32
    %0 = arith.cmpi eq, %arg1, %c0_i32 : i32
    %1 = arith.extui %0 : i1 to i32
    %c0_i32_0 = arith.constant 0 : i32
    %2 = arith.cmpi ne, %1, %c0_i32_0 : i32
    scf.if %2 {
      %c0_i32_62 = arith.constant 0 : i32
      %233 = tpu.memref_slice %arg16[%c0_i32_62] : memref<4x!tpu.dma_semaphore, #tpu.memory_space<semaphore_mem>> -> memref<1x!tpu.dma_semaphore, #tpu.memory_space<semaphore_mem>>
      %234 = tpu.memref_squeeze %233 : memref<1x!tpu.dma_semaphore, #tpu.memory_space<semaphore_mem>> -> memref<!tpu.dma_semaphore, #tpu.memory_space<semaphore_mem>>
      tpu.enqueue_dma source(%arg4 : memref<2x32x96xf32, #tpu.memory_space<any>>) target(%arg12 : memref<2x32x96xf32, #tpu.memory_space<vmem>>) target_semaphore(%234 : memref<!tpu.dma_semaphore, #tpu.memory_space<semaphore_mem>>)
      %c2_i32 = arith.constant 2 : i32
      %235 = tpu.memref_slice %arg16[%c2_i32] : memref<4x!tpu.dma_semaphore, #tpu.memory_space<semaphore_mem>> -> memref<1x!tpu.dma_semaphore, #tpu.memory_space<semaphore_mem>>
      %236 = tpu.memref_squeeze %235 : memref<1x!tpu.dma_semaphore, #tpu.memory_space<semaphore_mem>> -> memref<!tpu.dma_semaphore, #tpu.memory_space<semaphore_mem>>
      tpu.enqueue_dma source(%arg6 : memref<2x1x96xf32, #tpu.memory_space<any>>) target(%arg14 : memref<2x1x96xf32, #tpu.memory_space<vmem>>) target_semaphore(%236 : memref<!tpu.dma_semaphore, #tpu.memory_space<semaphore_mem>>)
      %c1_i32_63 = arith.constant 1 : i32
      %237 = tpu.memref_slice %arg16[%c1_i32_63] : memref<4x!tpu.dma_semaphore, #tpu.memory_space<semaphore_mem>> -> memref<1x!tpu.dma_semaphore, #tpu.memory_space<semaphore_mem>>
      %238 = tpu.memref_squeeze %237 : memref<1x!tpu.dma_semaphore, #tpu.memory_space<semaphore_mem>> -> memref<!tpu.dma_semaphore, #tpu.memory_space<semaphore_mem>>
      tpu.enqueue_dma source(%arg5 : memref<2x32x96xf32, #tpu.memory_space<any>>) target(%arg13 : memref<2x32x96xf32, #tpu.memory_space<vmem>>) target_semaphore(%238 : memref<!tpu.dma_semaphore, #tpu.memory_space<semaphore_mem>>)
      %c3_i32 = arith.constant 3 : i32
      %239 = tpu.memref_slice %arg16[%c3_i32] : memref<4x!tpu.dma_semaphore, #tpu.memory_space<semaphore_mem>> -> memref<1x!tpu.dma_semaphore, #tpu.memory_space<semaphore_mem>>
      %240 = tpu.memref_squeeze %239 : memref<1x!tpu.dma_semaphore, #tpu.memory_space<semaphore_mem>> -> memref<!tpu.dma_semaphore, #tpu.memory_space<semaphore_mem>>
      tpu.enqueue_dma source(%arg7 : memref<2x1x32xf32, #tpu.memory_space<any>>) target(%arg15 : memref<2x1x32xf32, #tpu.memory_space<vmem>>) target_semaphore(%240 : memref<!tpu.dma_semaphore, #tpu.memory_space<semaphore_mem>>)
      %c0_i32_64 = arith.constant 0 : i32
      %241 = tpu.memref_slice %arg16[%c0_i32_64] : memref<4x!tpu.dma_semaphore, #tpu.memory_space<semaphore_mem>> -> memref<1x!tpu.dma_semaphore, #tpu.memory_space<semaphore_mem>>
      %242 = tpu.memref_squeeze %241 : memref<1x!tpu.dma_semaphore, #tpu.memory_space<semaphore_mem>> -> memref<!tpu.dma_semaphore, #tpu.memory_space<semaphore_mem>>
      tpu.wait_dma2 semaphore(%242 : memref<!tpu.dma_semaphore, #tpu.memory_space<semaphore_mem>>) src(%arg4 : memref<2x32x96xf32, #tpu.memory_space<any>>) dst(%arg12 : memref<2x32x96xf32, #tpu.memory_space<vmem>>)
      %c2_i32_65 = arith.constant 2 : i32
      %243 = tpu.memref_slice %arg16[%c2_i32_65] : memref<4x!tpu.dma_semaphore, #tpu.memory_space<semaphore_mem>> -> memref<1x!tpu.dma_semaphore, #tpu.memory_space<semaphore_mem>>
      %244 = tpu.memref_squeeze %243 : memref<1x!tpu.dma_semaphore, #tpu.memory_space<semaphore_mem>> -> memref<!tpu.dma_semaphore, #tpu.memory_space<semaphore_mem>>
      tpu.wait_dma2 semaphore(%244 : memref<!tpu.dma_semaphore, #tpu.memory_space<semaphore_mem>>) src(%arg6 : memref<2x1x96xf32, #tpu.memory_space<any>>) dst(%arg14 : memref<2x1x96xf32, #tpu.memory_space<vmem>>)
      %c0_66 = arith.constant 0 : index
      %c0_67 = arith.constant 0 : index
      %c0_68 = arith.constant 0 : index
      %245 = vector.load %arg2[%c0_66, %c0_67, %c0_68] : memref<1x64x32xf32, #tpu.memory_space<vmem>>, vector<1x64x32xf32>
      %246 = vector.shape_cast %245 : vector<1x64x32xf32> to vector<64x32xf32>
      %c0_69 = arith.constant 0 : index
      %c0_70 = arith.constant 0 : index
      %c0_71 = arith.constant 0 : index
      %247 = vector.load %arg12[%c0_69, %c0_70, %c0_71] : memref<2x32x96xf32, #tpu.memory_space<vmem>>, vector<1x32x96xf32>
      %248 = vector.shape_cast %247 : vector<1x32x96xf32> to vector<32x96xf32>
      %cst_72 = arith.constant dense<0.000000e+00> : vector<64x96xf32>
      %249 = tpu.matmul %246, %248, %cst_72 {dimension_numbers = #tpu.dot_dimension_numbers<[1], [0], [0], [1], [0, 0, 1, 1], [], []>} : vector<64x32xf32>, vector<32x96xf32>, vector<64x96xf32> -> vector<64x96xf32>
      %c0_73 = arith.constant 0 : index
      %c0_74 = arith.constant 0 : index
      %c0_75 = arith.constant 0 : index
      %250 = vector.load %arg14[%c0_73, %c0_74, %c0_75] : memref<2x1x96xf32, #tpu.memory_space<vmem>>, vector<1x1x96xf32>
      %251 = vector.shape_cast %250 : vector<1x1x96xf32> to vector<1x96xf32>
      %252 = vector.broadcast %251 : vector<1x96xf32> to vector<64x96xf32>
      %253 = arith.addf %249, %252 : vector<64x96xf32>
      %c0_76 = arith.constant 0 : index
      %c0_77 = arith.constant 0 : index
      %254 = vector.load %arg10[%c0_76, %c0_77] : memref<64x96xf32, #tpu.memory_space<vmem>>, vector<64x96xf32>
      tpu.vector_store %arg10[%c0_76, %c0_77], %253 {strides = array<i32>} : memref<64x96xf32, #tpu.memory_space<vmem>>, vector<64x96xf32>,
      %c1_i32_78 = arith.constant 1 : i32
      %255 = tpu.memref_slice %arg16[%c1_i32_78] : memref<4x!tpu.dma_semaphore, #tpu.memory_space<semaphore_mem>> -> memref<1x!tpu.dma_semaphore, #tpu.memory_space<semaphore_mem>>
      %256 = tpu.memref_squeeze %255 : memref<1x!tpu.dma_semaphore, #tpu.memory_space<semaphore_mem>> -> memref<!tpu.dma_semaphore, #tpu.memory_space<semaphore_mem>>
      tpu.wait_dma2 semaphore(%256 : memref<!tpu.dma_semaphore, #tpu.memory_space<semaphore_mem>>) src(%arg5 : memref<2x32x96xf32, #tpu.memory_space<any>>) dst(%arg13 : memref<2x32x96xf32, #tpu.memory_space<vmem>>)
      %c3_i32_79 = arith.constant 3 : i32
      %257 = tpu.memref_slice %arg16[%c3_i32_79] : memref<4x!tpu.dma_semaphore, #tpu.memory_space<semaphore_mem>> -> memref<1x!tpu.dma_semaphore, #tpu.memory_space<semaphore_mem>>
      %258 = tpu.memref_squeeze %257 : memref<1x!tpu.dma_semaphore, #tpu.memory_space<semaphore_mem>> -> memref<!tpu.dma_semaphore, #tpu.memory_space<semaphore_mem>>
      tpu.wait_dma2 semaphore(%258 : memref<!tpu.dma_semaphore, #tpu.memory_space<semaphore_mem>>) src(%arg7 : memref<2x1x32xf32, #tpu.memory_space<any>>) dst(%arg15 : memref<2x1x32xf32, #tpu.memory_space<vmem>>)
    } else {
    }
    %c0_i32_1 = arith.constant 0 : i32
    %3 = arith.cmpi sgt, %arg1, %c0_i32_1 : i32
    %4 = arith.extui %3 : i1 to i32
    %c0_i32_2 = arith.constant 0 : i32
    %5 = arith.cmpi ne, %4, %c0_i32_2 : i32
    scf.if %5 {
      %c0_62 = arith.constant 0 : index
      %c0_63 = arith.constant 0 : index
      %233 = vector.load %arg9[%c0_62, %c0_63] : memref<64x32xf32, #tpu.memory_space<vmem>>, vector<64x32xf32>
      %234 = arith.index_cast %arg1 : i32 to index
      %c0_64 = arith.constant 0 : index
      %c0_65 = arith.constant 0 : index
      %235 = vector.load %arg12[%234, %c0_64, %c0_65] : memref<2x32x96xf32, #tpu.memory_space<vmem>>, vector<1x32x96xf32>
      %236 = vector.shape_cast %235 : vector<1x32x96xf32> to vector<32x96xf32>
      %cst_66 = arith.constant dense<0.000000e+00> : vector<64x96xf32>
      %237 = tpu.matmul %233, %236, %cst_66 {dimension_numbers = #tpu.dot_dimension_numbers<[1], [0], [0], [1], [0, 0, 1, 1], [], []>} : vector<64x32xf32>, vector<32x96xf32>, vector<64x96xf32> -> vector<64x96xf32>
      %238 = arith.index_cast %arg1 : i32 to index
      %c0_67 = arith.constant 0 : index
      %c0_68 = arith.constant 0 : index
      %239 = vector.load %arg14[%238, %c0_67, %c0_68] : memref<2x1x96xf32, #tpu.memory_space<vmem>>, vector<1x1x96xf32>
      %240 = vector.shape_cast %239 : vector<1x1x96xf32> to vector<1x96xf32>
      %241 = vector.broadcast %240 : vector<1x96xf32> to vector<64x96xf32>
      %242 = arith.addf %237, %241 : vector<64x96xf32>
      %c0_69 = arith.constant 0 : index
      %c0_70 = arith.constant 0 : index
      %243 = vector.load %arg10[%c0_69, %c0_70] : memref<64x96xf32, #tpu.memory_space<vmem>>, vector<64x96xf32>
      tpu.vector_store %arg10[%c0_69, %c0_70], %242 {strides = array<i32>} : memref<64x96xf32, #tpu.memory_space<vmem>>, vector<64x96xf32>,
    } else {
    }
    %6 = arith.index_cast %arg1 : i32 to index
    %c0 = arith.constant 0 : index
    %c0_3 = arith.constant 0 : index
    %7 = vector.load %arg13[%6, %c0, %c0_3] : memref<2x32x96xf32, #tpu.memory_space<vmem>>, vector<1x32x96xf32>
    %8 = vector.shape_cast %7 : vector<1x32x96xf32> to vector<32x96xf32>
    %9 = arith.index_cast %arg1 : i32 to index
    %c0_4 = arith.constant 0 : index
    %c0_5 = arith.constant 0 : index
    %10 = vector.load %arg15[%9, %c0_4, %c0_5] : memref<2x1x32xf32, #tpu.memory_space<vmem>>, vector<1x1x32xf32>
    %11 = vector.shape_cast %10 : vector<1x1x32xf32> to vector<1x32xf32>
    %12 = vector.shape_cast %11 : vector<1x32xf32> to vector<1x32xf32>
    %13 = vector.broadcast %12 : vector<1x32xf32> to vector<8x32xf32>
    %c0_6 = arith.constant 0 : index
    %c0_7 = arith.constant 0 : index
    %c0_8 = arith.constant 0 : index
    %14 = vector.load %arg3[%c0_6, %c0_7, %c0_8] : memref<1x8x32xf32, #tpu.memory_space<vmem>>, vector<1x8x32xf32>
    %15 = vector.shape_cast %14 : vector<1x8x32xf32> to vector<8x32xf32>
    %c0_9 = arith.constant 0 : index
    %c0_10 = arith.constant 0 : index
    %16 = vector.load %arg10[%c0_9, %c0_10] : memref<64x96xf32, #tpu.memory_space<vmem>>, vector<8x96xf32>
    %cst = arith.constant dense<0.000000e+00> : vector<8x96xf32>
    %17 = tpu.matmul %15, %8, %cst {dimension_numbers = #tpu.dot_dimension_numbers<[1], [0], [0], [1], [0, 0, 1, 1], [], []>} : vector<8x32xf32>, vector<32x96xf32>, vector<8x96xf32> -> vector<8x96xf32>
    %18 = vector.extract_strided_slice %16 {offsets = [0, 0], sizes = [8, 64], strides = [1, 1]} : vector<8x96xf32> to vector<8x64xf32>
    %19 = vector.extract_strided_slice %17 {offsets = [0, 0], sizes = [8, 64], strides = [1, 1]} : vector<8x96xf32> to vector<8x64xf32>
    %20 = arith.addf %18, %19 : vector<8x64xf32>
    %21 = arith.negf %20 : vector<8x64xf32>
    %22 = math.exp %21 : vector<8x64xf32>
    %cst_11 = arith.constant 1.000000e+00 : f32
    %23 = vector.broadcast %cst_11 : f32 to vector<8x64xf32>
    %24 = arith.addf %23, %22 : vector<8x64xf32>
    %25 = arith.divf %23, %24 : vector<8x64xf32>
    %26 = vector.extract_strided_slice %25 {offsets = [0, 0], sizes = [8, 32], strides = [1, 1]} : vector<8x64xf32> to vector<8x32xf32>
    %27 = vector.extract_strided_slice %25 {offsets = [0, 32], sizes = [8, 32], strides = [1, 1]} : vector<8x64xf32> to vector<8x32xf32>
    %28 = vector.extract_strided_slice %16 {offsets = [0, 64], sizes = [8, 32], strides = [1, 1]} : vector<8x96xf32> to vector<8x32xf32>
    %29 = vector.extract_strided_slice %17 {offsets = [0, 64], sizes = [8, 32], strides = [1, 1]} : vector<8x96xf32> to vector<8x32xf32>
    %30 = arith.addf %29, %13 : vector<8x32xf32>
    %31 = arith.mulf %26, %30 : vector<8x32xf32>
    %32 = arith.addf %28, %31 : vector<8x32xf32>
    %33 = math.tanh %32 : vector<8x32xf32>
    %cst_12 = arith.constant 1.000000e+00 : f32
    %34 = vector.broadcast %cst_12 : f32 to vector<8x32xf32>
    %35 = arith.subf %34, %27 : vector<8x32xf32>
    %36 = arith.mulf %35, %33 : vector<8x32xf32>
    %37 = arith.mulf %27, %15 : vector<8x32xf32>
    %38 = arith.addf %36, %37 : vector<8x32xf32>
    %c1_i32 = arith.constant 1 : i32
    %39 = arith.cmpi slt, %arg1, %c1_i32 : i32
    %40 = arith.extui %39 : i1 to i32
    %c0_i32_13 = arith.constant 0 : i32
    %41 = arith.cmpi ne, %40, %c0_i32_13 : i32
    scf.if %41 {
      %c0_62 = arith.constant 0 : index
      %c0_63 = arith.constant 0 : index
      %233 = vector.load %arg9[%c0_62, %c0_63] : memref<64x32xf32, #tpu.memory_space<vmem>>, vector<8x32xf32>
      tpu.vector_store %arg9[%c0_62, %c0_63], %38 {strides = array<i32>} : memref<64x32xf32, #tpu.memory_space<vmem>>, vector<8x32xf32>,
    } else {
    }
    %c8 = arith.constant 8 : index
    %c0_14 = arith.constant 0 : index
    %42 = vector.load %arg10[%c8, %c0_14] : memref<64x96xf32, #tpu.memory_space<vmem>>, vector<8x96xf32>
    %cst_15 = arith.constant dense<0.000000e+00> : vector<8x96xf32>
    %43 = tpu.matmul %38, %8, %cst_15 {dimension_numbers = #tpu.dot_dimension_numbers<[1], [0], [0], [1], [0, 0, 1, 1], [], []>} : vector<8x32xf32>, vector<32x96xf32>, vector<8x96xf32> -> vector<8x96xf32>
    %44 = vector.extract_strided_slice %42 {offsets = [0, 0], sizes = [8, 64], strides = [1, 1]} : vector<8x96xf32> to vector<8x64xf32>
    %45 = vector.extract_strided_slice %43 {offsets = [0, 0], sizes = [8, 64], strides = [1, 1]} : vector<8x96xf32> to vector<8x64xf32>
    %46 = arith.addf %44, %45 : vector<8x64xf32>
    %47 = arith.negf %46 : vector<8x64xf32>
    %48 = math.exp %47 : vector<8x64xf32>
    %cst_16 = arith.constant 1.000000e+00 : f32
    %49 = vector.broadcast %cst_16 : f32 to vector<8x64xf32>
    %50 = arith.addf %49, %48 : vector<8x64xf32>
    %51 = arith.divf %49, %50 : vector<8x64xf32>
    %52 = vector.extract_strided_slice %51 {offsets = [0, 0], sizes = [8, 32], strides = [1, 1]} : vector<8x64xf32> to vector<8x32xf32>
    %53 = vector.extract_strided_slice %51 {offsets = [0, 32], sizes = [8, 32], strides = [1, 1]} : vector<8x64xf32> to vector<8x32xf32>
    %54 = vector.extract_strided_slice %42 {offsets = [0, 64], sizes = [8, 32], strides = [1, 1]} : vector<8x96xf32> to vector<8x32xf32>
    %55 = vector.extract_strided_slice %43 {offsets = [0, 64], sizes = [8, 32], strides = [1, 1]} : vector<8x96xf32> to vector<8x32xf32>
    %56 = arith.addf %55, %13 : vector<8x32xf32>
    %57 = arith.mulf %52, %56 : vector<8x32xf32>
    %58 = arith.addf %54, %57 : vector<8x32xf32>
    %59 = math.tanh %58 : vector<8x32xf32>
    %cst_17 = arith.constant 1.000000e+00 : f32
    %60 = vector.broadcast %cst_17 : f32 to vector<8x32xf32>
    %61 = arith.subf %60, %53 : vector<8x32xf32>
    %62 = arith.mulf %61, %59 : vector<8x32xf32>
    %63 = arith.mulf %53, %38 : vector<8x32xf32>
    %64 = arith.addf %62, %63 : vector<8x32xf32>
    %c1_i32_18 = arith.constant 1 : i32
    %65 = arith.cmpi slt, %arg1, %c1_i32_18 : i32
    %66 = arith.extui %65 : i1 to i32
    %c0_i32_19 = arith.constant 0 : i32
    %67 = arith.cmpi ne, %66, %c0_i32_19 : i32
    scf.if %67 {
      %c8_62 = arith.constant 8 : index
      %c0_63 = arith.constant 0 : index
      %233 = vector.load %arg9[%c8_62, %c0_63] : memref<64x32xf32, #tpu.memory_space<vmem>>, vector<8x32xf32>
      tpu.vector_store %arg9[%c8_62, %c0_63], %64 {strides = array<i32>} : memref<64x32xf32, #tpu.memory_space<vmem>>, vector<8x32xf32>,
    } else {
    }
    %c16 = arith.constant 16 : index
    %c0_20 = arith.constant 0 : index
    %68 = vector.load %arg10[%c16, %c0_20] : memref<64x96xf32, #tpu.memory_space<vmem>>, vector<8x96xf32>
    %cst_21 = arith.constant dense<0.000000e+00> : vector<8x96xf32>
    %69 = tpu.matmul %64, %8, %cst_21 {dimension_numbers = #tpu.dot_dimension_numbers<[1], [0], [0], [1], [0, 0, 1, 1], [], []>} : vector<8x32xf32>, vector<32x96xf32>, vector<8x96xf32> -> vector<8x96xf32>
    %70 = vector.extract_strided_slice %68 {offsets = [0, 0], sizes = [8, 64], strides = [1, 1]} : vector<8x96xf32> to vector<8x64xf32>
    %71 = vector.extract_strided_slice %69 {offsets = [0, 0], sizes = [8, 64], strides = [1, 1]} : vector<8x96xf32> to vector<8x64xf32>
    %72 = arith.addf %70, %71 : vector<8x64xf32>
    %73 = arith.negf %72 : vector<8x64xf32>
    %74 = math.exp %73 : vector<8x64xf32>
    %cst_22 = arith.constant 1.000000e+00 : f32
    %75 = vector.broadcast %cst_22 : f32 to vector<8x64xf32>
    %76 = arith.addf %75, %74 : vector<8x64xf32>
    %77 = arith.divf %75, %76 : vector<8x64xf32>
    %78 = vector.extract_strided_slice %77 {offsets = [0, 0], sizes = [8, 32], strides = [1, 1]} : vector<8x64xf32> to vector<8x32xf32>
    %79 = vector.extract_strided_slice %77 {offsets = [0, 32], sizes = [8, 32], strides = [1, 1]} : vector<8x64xf32> to vector<8x32xf32>
    %80 = vector.extract_strided_slice %68 {offsets = [0, 64], sizes = [8, 32], strides = [1, 1]} : vector<8x96xf32> to vector<8x32xf32>
    %81 = vector.extract_strided_slice %69 {offsets = [0, 64], sizes = [8, 32], strides = [1, 1]} : vector<8x96xf32> to vector<8x32xf32>
    %82 = arith.addf %81, %13 : vector<8x32xf32>
    %83 = arith.mulf %78, %82 : vector<8x32xf32>
    %84 = arith.addf %80, %83 : vector<8x32xf32>
    %85 = math.tanh %84 : vector<8x32xf32>
    %cst_23 = arith.constant 1.000000e+00 : f32
    %86 = vector.broadcast %cst_23 : f32 to vector<8x32xf32>
    %87 = arith.subf %86, %79 : vector<8x32xf32>
    %88 = arith.mulf %87, %85 : vector<8x32xf32>
    %89 = arith.mulf %79, %64 : vector<8x32xf32>
    %90 = arith.addf %88, %89 : vector<8x32xf32>
    %c1_i32_24 = arith.constant 1 : i32
    %91 = arith.cmpi slt, %arg1, %c1_i32_24 : i32
    %92 = arith.extui %91 : i1 to i32
    %c0_i32_25 = arith.constant 0 : i32
    %93 = arith.cmpi ne, %92, %c0_i32_25 : i32
    scf.if %93 {
      %c16_62 = arith.constant 16 : index
      %c0_63 = arith.constant 0 : index
      %233 = vector.load %arg9[%c16_62, %c0_63] : memref<64x32xf32, #tpu.memory_space<vmem>>, vector<8x32xf32>
      tpu.vector_store %arg9[%c16_62, %c0_63], %90 {strides = array<i32>} : memref<64x32xf32, #tpu.memory_space<vmem>>, vector<8x32xf32>,
    } else {
    }
    %c24 = arith.constant 24 : index
    %c0_26 = arith.constant 0 : index
    %94 = vector.load %arg10[%c24, %c0_26] : memref<64x96xf32, #tpu.memory_space<vmem>>, vector<8x96xf32>
    %cst_27 = arith.constant dense<0.000000e+00> : vector<8x96xf32>
    %95 = tpu.matmul %90, %8, %cst_27 {dimension_numbers = #tpu.dot_dimension_numbers<[1], [0], [0], [1], [0, 0, 1, 1], [], []>} : vector<8x32xf32>, vector<32x96xf32>, vector<8x96xf32> -> vector<8x96xf32>
    %96 = vector.extract_strided_slice %94 {offsets = [0, 0], sizes = [8, 64], strides = [1, 1]} : vector<8x96xf32> to vector<8x64xf32>
    %97 = vector.extract_strided_slice %95 {offsets = [0, 0], sizes = [8, 64], strides = [1, 1]} : vector<8x96xf32> to vector<8x64xf32>
    %98 = arith.addf %96, %97 : vector<8x64xf32>
    %99 = arith.negf %98 : vector<8x64xf32>
    %100 = math.exp %99 : vector<8x64xf32>
    %cst_28 = arith.constant 1.000000e+00 : f32
    %101 = vector.broadcast %cst_28 : f32 to vector<8x64xf32>
    %102 = arith.addf %101, %100 : vector<8x64xf32>
    %103 = arith.divf %101, %102 : vector<8x64xf32>
    %104 = vector.extract_strided_slice %103 {offsets = [0, 0], sizes = [8, 32], strides = [1, 1]} : vector<8x64xf32> to vector<8x32xf32>
    %105 = vector.extract_strided_slice %103 {offsets = [0, 32], sizes = [8, 32], strides = [1, 1]} : vector<8x64xf32> to vector<8x32xf32>
    %106 = vector.extract_strided_slice %94 {offsets = [0, 64], sizes = [8, 32], strides = [1, 1]} : vector<8x96xf32> to vector<8x32xf32>
    %107 = vector.extract_strided_slice %95 {offsets = [0, 64], sizes = [8, 32], strides = [1, 1]} : vector<8x96xf32> to vector<8x32xf32>
    %108 = arith.addf %107, %13 : vector<8x32xf32>
    %109 = arith.mulf %104, %108 : vector<8x32xf32>
    %110 = arith.addf %106, %109 : vector<8x32xf32>
    %111 = math.tanh %110 : vector<8x32xf32>
    %cst_29 = arith.constant 1.000000e+00 : f32
    %112 = vector.broadcast %cst_29 : f32 to vector<8x32xf32>
    %113 = arith.subf %112, %105 : vector<8x32xf32>
    %114 = arith.mulf %113, %111 : vector<8x32xf32>
    %115 = arith.mulf %105, %90 : vector<8x32xf32>
    %116 = arith.addf %114, %115 : vector<8x32xf32>
    %c1_i32_30 = arith.constant 1 : i32
    %117 = arith.cmpi slt, %arg1, %c1_i32_30 : i32
    %118 = arith.extui %117 : i1 to i32
    %c0_i32_31 = arith.constant 0 : i32
    %119 = arith.cmpi ne, %118, %c0_i32_31 : i32
    scf.if %119 {
      %c24_62 = arith.constant 24 : index
      %c0_63 = arith.constant 0 : index
      %233 = vector.load %arg9[%c24_62, %c0_63] : memref<64x32xf32, #tpu.memory_space<vmem>>, vector<8x32xf32>
      tpu.vector_store %arg9[%c24_62, %c0_63], %116 {strides = array<i32>} : memref<64x32xf32, #tpu.memory_space<vmem>>, vector<8x32xf32>,
    } else {
    }
    %c32 = arith.constant 32 : index
    %c0_32 = arith.constant 0 : index
    %120 = vector.load %arg10[%c32, %c0_32] : memref<64x96xf32, #tpu.memory_space<vmem>>, vector<8x96xf32>
    %cst_33 = arith.constant dense<0.000000e+00> : vector<8x96xf32>
    %121 = tpu.matmul %116, %8, %cst_33 {dimension_numbers = #tpu.dot_dimension_numbers<[1], [0], [0], [1], [0, 0, 1, 1], [], []>} : vector<8x32xf32>, vector<32x96xf32>, vector<8x96xf32> -> vector<8x96xf32>
    %122 = vector.extract_strided_slice %120 {offsets = [0, 0], sizes = [8, 64], strides = [1, 1]} : vector<8x96xf32> to vector<8x64xf32>
    %123 = vector.extract_strided_slice %121 {offsets = [0, 0], sizes = [8, 64], strides = [1, 1]} : vector<8x96xf32> to vector<8x64xf32>
    %124 = arith.addf %122, %123 : vector<8x64xf32>
    %125 = arith.negf %124 : vector<8x64xf32>
    %126 = math.exp %125 : vector<8x64xf32>
    %cst_34 = arith.constant 1.000000e+00 : f32
    %127 = vector.broadcast %cst_34 : f32 to vector<8x64xf32>
    %128 = arith.addf %127, %126 : vector<8x64xf32>
    %129 = arith.divf %127, %128 : vector<8x64xf32>
    %130 = vector.extract_strided_slice %129 {offsets = [0, 0], sizes = [8, 32], strides = [1, 1]} : vector<8x64xf32> to vector<8x32xf32>
    %131 = vector.extract_strided_slice %129 {offsets = [0, 32], sizes = [8, 32], strides = [1, 1]} : vector<8x64xf32> to vector<8x32xf32>
    %132 = vector.extract_strided_slice %120 {offsets = [0, 64], sizes = [8, 32], strides = [1, 1]} : vector<8x96xf32> to vector<8x32xf32>
    %133 = vector.extract_strided_slice %121 {offsets = [0, 64], sizes = [8, 32], strides = [1, 1]} : vector<8x96xf32> to vector<8x32xf32>
    %134 = arith.addf %133, %13 : vector<8x32xf32>
    %135 = arith.mulf %130, %134 : vector<8x32xf32>
    %136 = arith.addf %132, %135 : vector<8x32xf32>
    %137 = math.tanh %136 : vector<8x32xf32>
    %cst_35 = arith.constant 1.000000e+00 : f32
    %138 = vector.broadcast %cst_35 : f32 to vector<8x32xf32>
    %139 = arith.subf %138, %131 : vector<8x32xf32>
    %140 = arith.mulf %139, %137 : vector<8x32xf32>
    %141 = arith.mulf %131, %116 : vector<8x32xf32>
    %142 = arith.addf %140, %141 : vector<8x32xf32>
    %c1_i32_36 = arith.constant 1 : i32
    %143 = arith.cmpi slt, %arg1, %c1_i32_36 : i32
    %144 = arith.extui %143 : i1 to i32
    %c0_i32_37 = arith.constant 0 : i32
    %145 = arith.cmpi ne, %144, %c0_i32_37 : i32
    scf.if %145 {
      %c32_62 = arith.constant 32 : index
      %c0_63 = arith.constant 0 : index
      %233 = vector.load %arg9[%c32_62, %c0_63] : memref<64x32xf32, #tpu.memory_space<vmem>>, vector<8x32xf32>
      tpu.vector_store %arg9[%c32_62, %c0_63], %142 {strides = array<i32>} : memref<64x32xf32, #tpu.memory_space<vmem>>, vector<8x32xf32>,
    } else {
    }
    %c40 = arith.constant 40 : index
    %c0_38 = arith.constant 0 : index
    %146 = vector.load %arg10[%c40, %c0_38] : memref<64x96xf32, #tpu.memory_space<vmem>>, vector<8x96xf32>
    %cst_39 = arith.constant dense<0.000000e+00> : vector<8x96xf32>
    %147 = tpu.matmul %142, %8, %cst_39 {dimension_numbers = #tpu.dot_dimension_numbers<[1], [0], [0], [1], [0, 0, 1, 1], [], []>} : vector<8x32xf32>, vector<32x96xf32>, vector<8x96xf32> -> vector<8x96xf32>
    %148 = vector.extract_strided_slice %146 {offsets = [0, 0], sizes = [8, 64], strides = [1, 1]} : vector<8x96xf32> to vector<8x64xf32>
    %149 = vector.extract_strided_slice %147 {offsets = [0, 0], sizes = [8, 64], strides = [1, 1]} : vector<8x96xf32> to vector<8x64xf32>
    %150 = arith.addf %148, %149 : vector<8x64xf32>
    %151 = arith.negf %150 : vector<8x64xf32>
    %152 = math.exp %151 : vector<8x64xf32>
    %cst_40 = arith.constant 1.000000e+00 : f32
    %153 = vector.broadcast %cst_40 : f32 to vector<8x64xf32>
    %154 = arith.addf %153, %152 : vector<8x64xf32>
    %155 = arith.divf %153, %154 : vector<8x64xf32>
    %156 = vector.extract_strided_slice %155 {offsets = [0, 0], sizes = [8, 32], strides = [1, 1]} : vector<8x64xf32> to vector<8x32xf32>
    %157 = vector.extract_strided_slice %155 {offsets = [0, 32], sizes = [8, 32], strides = [1, 1]} : vector<8x64xf32> to vector<8x32xf32>
    %158 = vector.extract_strided_slice %146 {offsets = [0, 64], sizes = [8, 32], strides = [1, 1]} : vector<8x96xf32> to vector<8x32xf32>
    %159 = vector.extract_strided_slice %147 {offsets = [0, 64], sizes = [8, 32], strides = [1, 1]} : vector<8x96xf32> to vector<8x32xf32>
    %160 = arith.addf %159, %13 : vector<8x32xf32>
    %161 = arith.mulf %156, %160 : vector<8x32xf32>
    %162 = arith.addf %158, %161 : vector<8x32xf32>
    %163 = math.tanh %162 : vector<8x32xf32>
    %cst_41 = arith.constant 1.000000e+00 : f32
    %164 = vector.broadcast %cst_41 : f32 to vector<8x32xf32>
    %165 = arith.subf %164, %157 : vector<8x32xf32>
    %166 = arith.mulf %165, %163 : vector<8x32xf32>
    %167 = arith.mulf %157, %142 : vector<8x32xf32>
    %168 = arith.addf %166, %167 : vector<8x32xf32>
    %c1_i32_42 = arith.constant 1 : i32
    %169 = arith.cmpi slt, %arg1, %c1_i32_42 : i32
    %170 = arith.extui %169 : i1 to i32
    %c0_i32_43 = arith.constant 0 : i32
    %171 = arith.cmpi ne, %170, %c0_i32_43 : i32
    scf.if %171 {
      %c40_62 = arith.constant 40 : index
      %c0_63 = arith.constant 0 : index
      %233 = vector.load %arg9[%c40_62, %c0_63] : memref<64x32xf32, #tpu.memory_space<vmem>>, vector<8x32xf32>
      tpu.vector_store %arg9[%c40_62, %c0_63], %168 {strides = array<i32>} : memref<64x32xf32, #tpu.memory_space<vmem>>, vector<8x32xf32>,
    } else {
    }
    %c48 = arith.constant 48 : index
    %c0_44 = arith.constant 0 : index
    %172 = vector.load %arg10[%c48, %c0_44] : memref<64x96xf32, #tpu.memory_space<vmem>>, vector<8x96xf32>
    %cst_45 = arith.constant dense<0.000000e+00> : vector<8x96xf32>
    %173 = tpu.matmul %168, %8, %cst_45 {dimension_numbers = #tpu.dot_dimension_numbers<[1], [0], [0], [1], [0, 0, 1, 1], [], []>} : vector<8x32xf32>, vector<32x96xf32>, vector<8x96xf32> -> vector<8x96xf32>
    %174 = vector.extract_strided_slice %172 {offsets = [0, 0], sizes = [8, 64], strides = [1, 1]} : vector<8x96xf32> to vector<8x64xf32>
    %175 = vector.extract_strided_slice %173 {offsets = [0, 0], sizes = [8, 64], strides = [1, 1]} : vector<8x96xf32> to vector<8x64xf32>
    %176 = arith.addf %174, %175 : vector<8x64xf32>
    %177 = arith.negf %176 : vector<8x64xf32>
    %178 = math.exp %177 : vector<8x64xf32>
    %cst_46 = arith.constant 1.000000e+00 : f32
    %179 = vector.broadcast %cst_46 : f32 to vector<8x64xf32>
    %180 = arith.addf %179, %178 : vector<8x64xf32>
    %181 = arith.divf %179, %180 : vector<8x64xf32>
    %182 = vector.extract_strided_slice %181 {offsets = [0, 0], sizes = [8, 32], strides = [1, 1]} : vector<8x64xf32> to vector<8x32xf32>
    %183 = vector.extract_strided_slice %181 {offsets = [0, 32], sizes = [8, 32], strides = [1, 1]} : vector<8x64xf32> to vector<8x32xf32>
    %184 = vector.extract_strided_slice %172 {offsets = [0, 64], sizes = [8, 32], strides = [1, 1]} : vector<8x96xf32> to vector<8x32xf32>
    %185 = vector.extract_strided_slice %173 {offsets = [0, 64], sizes = [8, 32], strides = [1, 1]} : vector<8x96xf32> to vector<8x32xf32>
    %186 = arith.addf %185, %13 : vector<8x32xf32>
    %187 = arith.mulf %182, %186 : vector<8x32xf32>
    %188 = arith.addf %184, %187 : vector<8x32xf32>
    %189 = math.tanh %188 : vector<8x32xf32>
    %cst_47 = arith.constant 1.000000e+00 : f32
    %190 = vector.broadcast %cst_47 : f32 to vector<8x32xf32>
    %191 = arith.subf %190, %183 : vector<8x32xf32>
    %192 = arith.mulf %191, %189 : vector<8x32xf32>
    %193 = arith.mulf %183, %168 : vector<8x32xf32>
    %194 = arith.addf %192, %193 : vector<8x32xf32>
    %c1_i32_48 = arith.constant 1 : i32
    %195 = arith.cmpi slt, %arg1, %c1_i32_48 : i32
    %196 = arith.extui %195 : i1 to i32
    %c0_i32_49 = arith.constant 0 : i32
    %197 = arith.cmpi ne, %196, %c0_i32_49 : i32
    scf.if %197 {
      %c48_62 = arith.constant 48 : index
      %c0_63 = arith.constant 0 : index
      %233 = vector.load %arg9[%c48_62, %c0_63] : memref<64x32xf32, #tpu.memory_space<vmem>>, vector<8x32xf32>
      tpu.vector_store %arg9[%c48_62, %c0_63], %194 {strides = array<i32>} : memref<64x32xf32, #tpu.memory_space<vmem>>, vector<8x32xf32>,
    } else {
    }
    %c56 = arith.constant 56 : index
    %c0_50 = arith.constant 0 : index
    %198 = vector.load %arg10[%c56, %c0_50] : memref<64x96xf32, #tpu.memory_space<vmem>>, vector<8x96xf32>
    %cst_51 = arith.constant dense<0.000000e+00> : vector<8x96xf32>
    %199 = tpu.matmul %194, %8, %cst_51 {dimension_numbers = #tpu.dot_dimension_numbers<[1], [0], [0], [1], [0, 0, 1, 1], [], []>} : vector<8x32xf32>, vector<32x96xf32>, vector<8x96xf32> -> vector<8x96xf32>
    %200 = vector.extract_strided_slice %198 {offsets = [0, 0], sizes = [8, 64], strides = [1, 1]} : vector<8x96xf32> to vector<8x64xf32>
    %201 = vector.extract_strided_slice %199 {offsets = [0, 0], sizes = [8, 64], strides = [1, 1]} : vector<8x96xf32> to vector<8x64xf32>
    %202 = arith.addf %200, %201 : vector<8x64xf32>
    %203 = arith.negf %202 : vector<8x64xf32>
    %204 = math.exp %203 : vector<8x64xf32>
    %cst_52 = arith.constant 1.000000e+00 : f32
    %205 = vector.broadcast %cst_52 : f32 to vector<8x64xf32>
    %206 = arith.addf %205, %204 : vector<8x64xf32>
    %207 = arith.divf %205, %206 : vector<8x64xf32>
    %208 = vector.extract_strided_slice %207 {offsets = [0, 0], sizes = [8, 32], strides = [1, 1]} : vector<8x64xf32> to vector<8x32xf32>
    %209 = vector.extract_strided_slice %207 {offsets = [0, 32], sizes = [8, 32], strides = [1, 1]} : vector<8x64xf32> to vector<8x32xf32>
    %210 = vector.extract_strided_slice %198 {offsets = [0, 64], sizes = [8, 32], strides = [1, 1]} : vector<8x96xf32> to vector<8x32xf32>
    %211 = vector.extract_strided_slice %199 {offsets = [0, 64], sizes = [8, 32], strides = [1, 1]} : vector<8x96xf32> to vector<8x32xf32>
    %212 = arith.addf %211, %13 : vector<8x32xf32>
    %213 = arith.mulf %208, %212 : vector<8x32xf32>
    %214 = arith.addf %210, %213 : vector<8x32xf32>
    %215 = math.tanh %214 : vector<8x32xf32>
    %cst_53 = arith.constant 1.000000e+00 : f32
    %216 = vector.broadcast %cst_53 : f32 to vector<8x32xf32>
    %217 = arith.subf %216, %209 : vector<8x32xf32>
    %218 = arith.mulf %217, %215 : vector<8x32xf32>
    %219 = arith.mulf %209, %194 : vector<8x32xf32>
    %220 = arith.addf %218, %219 : vector<8x32xf32>
    %c1_i32_54 = arith.constant 1 : i32
    %221 = arith.cmpi slt, %arg1, %c1_i32_54 : i32
    %222 = arith.extui %221 : i1 to i32
    %c0_i32_55 = arith.constant 0 : i32
    %223 = arith.cmpi ne, %222, %c0_i32_55 : i32
    scf.if %223 {
      %c56_62 = arith.constant 56 : index
      %c0_63 = arith.constant 0 : index
      %233 = vector.load %arg9[%c56_62, %c0_63] : memref<64x32xf32, #tpu.memory_space<vmem>>, vector<8x32xf32>
      tpu.vector_store %arg9[%c56_62, %c0_63], %220 {strides = array<i32>} : memref<64x32xf32, #tpu.memory_space<vmem>>, vector<8x32xf32>,
    } else {
    }
    %c0_i32_56 = arith.constant 0 : i32
    %224 = arith.cmpi eq, %arg1, %c0_i32_56 : i32
    %225 = arith.extui %224 : i1 to i32
    %c0_i32_57 = arith.constant 0 : i32
    %226 = arith.cmpi ne, %225, %c0_i32_57 : i32
    scf.if %226 {
      %c0_62 = arith.constant 0 : index
      %c0_63 = arith.constant 0 : index
      %233 = vector.load %arg11[%c0_62, %c0_63] : memref<8x32xf32, #tpu.memory_space<vmem>>, vector<8x32xf32>
      tpu.vector_store %arg11[%c0_62, %c0_63], %220 {strides = array<i32>} : memref<8x32xf32, #tpu.memory_space<vmem>>, vector<8x32xf32>,
    } else {
    }
    %c0_i32_58 = arith.constant 0 : i32
    %227 = arith.cmpi sgt, %arg1, %c0_i32_58 : i32
    %228 = arith.extui %227 : i1 to i32
    %c0_i32_59 = arith.constant 0 : i32
    %229 = arith.cmpi ne, %228, %c0_i32_59 : i32
    scf.if %229 {
      %c0_62 = arith.constant 0 : index
      %c0_63 = arith.constant 0 : index
      %233 = vector.load %arg11[%c0_62, %c0_63] : memref<8x32xf32, #tpu.memory_space<vmem>>, vector<8x32xf32>
      %234 = arith.addf %233, %220 : vector<8x32xf32>
      %c0_64 = arith.constant 0 : index
      %c0_65 = arith.constant 0 : index
      %235 = vector.load %arg11[%c0_64, %c0_65] : memref<8x32xf32, #tpu.memory_space<vmem>>, vector<8x32xf32>
      tpu.vector_store %arg11[%c0_64, %c0_65], %234 {strides = array<i32>} : memref<8x32xf32, #tpu.memory_space<vmem>>, vector<8x32xf32>,
    } else {
    }
    %c1_i32_60 = arith.constant 1 : i32
    %230 = arith.cmpi eq, %arg1, %c1_i32_60 : i32
    %231 = arith.extui %230 : i1 to i32
    %c0_i32_61 = arith.constant 0 : i32
    %232 = arith.cmpi ne, %231, %c0_i32_61 : i32
    scf.if %232 {
      %c0_62 = arith.constant 0 : index
      %c0_63 = arith.constant 0 : index
      %233 = vector.load %arg11[%c0_62, %c0_63] : memref<8x32xf32, #tpu.memory_space<vmem>>, vector<8x32xf32>
      %cst_64 = arith.constant 5.000000e-01 : f32
      %234 = vector.broadcast %cst_64 : f32 to vector<8x32xf32>
      %235 = arith.mulf %233, %234 : vector<8x32xf32>
      %c0_65 = arith.constant 0 : index
      %c0_66 = arith.constant 0 : index
      %236 = vector.load %arg8[%c0_65, %c0_66] : memref<8x32xf32, #tpu.memory_space<vmem>>, vector<8x32xf32>
      tpu.vector_store %arg8[%c0_65, %c0_66], %235 {strides = array<i32>} : memref<8x32xf32, #tpu.memory_space<vmem>>, vector<8x32xf32>,
    } else {
    }
    return
  }
  func.func @transform_0(%arg0: i32, %arg1: i32) -> (i32, i32, i32) {
    %c0_i32 = arith.constant 0 : i32
    %c0_i32_0 = arith.constant 0 : i32
    %c0_i32_1 = arith.constant 0 : i32
    return %arg0, %c0_i32, %c0_i32_0 : i32, i32, i32
  }
  func.func @transform_1(%arg0: i32, %arg1: i32) -> (i32, i32, i32) {
    %c0_i32 = arith.constant 0 : i32
    %c0_i32_0 = arith.constant 0 : i32
    return %arg1, %arg0, %c0_i32 : i32, i32, i32
  }
  func.func @transform_6(%arg0: i32, %arg1: i32) -> (i32, i32) {
    %c0_i32 = arith.constant 0 : i32
    %c0_i32_0 = arith.constant 0 : i32
    return %arg0, %c0_i32 : i32, i32
  }
}

</mosaic_0001>

<llo_original>
// kernel: tpu_custom_call.1
$region0: #{tpu_custom_call.1}
  #allocation0 [shape = 'u32[]', space=smem, size = 0x4, offset = 0x4, fixed_abs, tag = 'smem constant byte address 0x4 - core index']
  #allocation1 [shape = 'u32[144,128]{1,0:T(1,128)}', space=vmem, size = 0x12000, scoped, tag = 'internal scratch']
  #allocation2 [shape = 'f32[64,32]{1,0:T(8,128)}', space=vmem, size = 0x8000, scoped, tag = 'scratch operand']
  #allocation3 [shape = 'f32[64,96]{1,0:T(8,128)}', space=vmem, size = 0x8000, scoped, tag = 'scratch operand']
  #allocation4 [shape = 'f32[8,32]{1,0:T(8,128)}', space=vmem, size = 0x1000, scoped, tag = 'scratch operand']
  #allocation5 [shape = 'f32[2,32,96]{2,1,0:T(8,128)}', space=vmem, size = 0x8000, scoped, tag = 'scratch operand']
  #allocation6 [shape = 'f32[2,32,96]{2,1,0:T(8,128)}', space=vmem, size = 0x8000, scoped, tag = 'scratch operand']
  #allocation7 [shape = 'f32[2,1,96]{2,1,0:T(1,128)}', space=vmem, size = 0x400, scoped, tag = 'scratch operand']
  #allocation8 [shape = 'f32[2,1,32]{2,1,0:T(1,128)}', space=vmem, size = 0x400, scoped, tag = 'scratch operand']
  #allocation9 [shape = 's32[4]{0}', space=sflag, size = 0x10, scoped, tag = 'scratch operand']
  #allocation12 [shape = 's32[]', space=sflag, size = 0x4, offset = 0, fixed_abs, tag = 'sflag constant byte address 0x0 - dummy sync flag']
  #allocation13 [shape = 's32[]', space=sflag, size = 0x4, offset = 0, fixed_abs, tag = 'sflag constant byte address 0x0 - dummy sync flag']
  #allocation14 [shape = 's32[]', space=sflag, size = 0x4, offset = 0, fixed_abs, tag = 'sflag constant byte address 0x0 - dummy sync flag']
  #allocation15 [shape = 's32[]', space=sflag, size = 0x4, offset = 0, fixed_abs, tag = 'sflag constant byte address 0x0 - dummy sync flag']
  #allocation16 [shape = 'u32[]', space=smem, size = 0x4, offset = 0x44, fixed_abs, tag = 'smem constant byte address 0x44 - assertion arg 0']
  #allocation17 [shape = 'u32[]', space=smem, size = 0x4, offset = 0x48, fixed_abs, tag = 'smem constant byte address 0x48 - assertion arg 1']
  #allocation18 [shape = 's32[]', space=sflag, size = 0x4, offset = 0, fixed_abs, tag = 'sflag constant byte address 0x0 - dummy sync flag']
  %s0 = inlined_call_operand.vmem [shape: f32[1,64,32], index: 0, kind: input, shape index: {}]
  %s1 = inlined_call_operand.vmem [shape: f32[2,8,32], index: 1, kind: input, shape index: {}]
  %s2 = inlined_call_operand.vmem [shape: f32[2,32,96], index: 2, kind: input, shape index: {}]
  %s3 = inlined_call_operand.hbm [shape: f32[2,32,96], index: 3, kind: input, shape index: {}]
  %s4 = inlined_call_operand.vmem [shape: f32[2,1,96], index: 4, kind: input, shape index: {}]
  %s5 = inlined_call_operand.vmem [shape: f32[2,1,32], index: 5, kind: input, shape index: {}]
  %s6 = inlined_call_operand.hbm [shape: f32[8,32], index: 6, kind: output, shape index: {}]
  %s7 = sld [smem:[#allocation0]]
  $region191: #{tpu_custom_call.1} parent=0
    _
  %s9 = ssub.s32 1, %s7
  %s10 = scalar_select 0, %s9, %s7
  $region1: #{tpu_custom_call.1} parent=0
    #allocation10 [shape = 'u8[4096]{0}', space=vmem, size = 0x1000, scoped, tag = 'output window, operand 0, single buffered']
    #allocation11 [shape = 's32[2]{0}', space=sflag, size = 0x8, scoped, tag = 'scoped memory for tpu_custom_call.1']
    %11 = vsyncpa [#allocation11], 0
    loop: start=0, step=1, limit=4
    $region2: #{tpu_custom_call.1} parent=1 // loop_pre_header
      _
    $region3: #{tpu_custom_call.1} parent=1 // loop_header
      %s13 = sphi 0, %s17
      %p14 = scmp.ge.s32.totalorder %s13, 4
      %s20 = sphi 0, %s32
      %s21 = sphi 0, %s28
      %s22 = sphi 0, %s20
      %s23 = sphi 0, %s21
      %s24 = sphi 0, %s22
      %s25 = sphi 0, %s23
      %s35 = sphi 0, %s37
      %s38 = sphi 0, %s35
      %s39 = sphi 0, %s38
      %s55 = sphi 0, %s39
      %s63 = sphi 0, %s65
      %s66 = sphi 0, %s63
      %s67 = sphi 0, %s66
      %s83 = sphi 0, %s67
      %s89 = sphi 0, %s91
      %s92 = sphi 0, %s89
      %s93 = sphi 0, %s92
      %s109 = sphi 0, %s93
    $region4: #{tpu_custom_call.1} parent=1 // loop_header_branch
      %16 = sbr.rel (%p14) target = $region8
    $region5: #{tpu_custom_call.1} parent=1 // loop_body
      %s18 = ssub.s32 %s13, 1
      %s19 = ssub.s32 %s13, 2
      %s26 = sadd.s32 1, %s21
      %p27 = scmp.ge.s32.totalorder %s26, 2
      %s28 = scalar_select %p27, 0, %s26
      %s29 = sadd.s32 1, %s20
      %s30 = scalar_select %p27, %s29, %s20
      %p31 = scmp.ge.s32.totalorder %s30, 1
      %s32 = scalar_select %p31, 0, %s30
      %s33 = ssub.s32 %s20, %s32
      %p34 = scmp.eq.s32.totalorder %s33, 0
      %s36 = sadd.s32 %s35, 1
      %s37 = scalar_select %p34, %s35, %s36
      %p40 = pneg %p34
      %p41 = scmp.eq.s32.totalorder %s13, 1
      %p42 = por %p40, %p41
      %p43 = scmp.ne.s32.totalorder %s35, %s38
      %p44 = scmp.eq.s32.totalorder %s13, 0
      %p45 = por %p43, %p44
      %p46 = scmp.ne.s32.totalorder %s35, %s38
      %p47 = scmp.eq.s32.totalorder %s18, 1
      %p48 = por %p46, %p47
      %p49 = scmp.ne.s32.totalorder %s38, %s39
      %p50 = scmp.eq.s32.totalorder %s18, 0
      %p51 = por %p49, %p50
      %p52 = scmp.ne.s32.totalorder %s38, %s39
      %p53 = scmp.eq.s32.totalorder %s19, 1
      %p54 = por %p52, %p53
      %p56 = scmp.ne.s32.totalorder %s39, %s55
      %p57 = scmp.eq.s32.totalorder %s19, 0
      %p58 = por %p56, %p57
      %s59 = ssub.s32 %s21, %s28
      %s60 = ssub.s32 %s20, %s32
      %s61 = sor.u32 %s59, %s60
      %p62 = scmp.eq.s32.totalorder %s61, 0
      %s64 = sadd.s32 %s63, 1
      %s65 = scalar_select %p62, %s63, %s64
      %p68 = pneg %p62
      %p69 = scmp.eq.s32.totalorder %s13, 1
      %p70 = por %p68, %p69
      %p71 = scmp.ne.s32.totalorder %s63, %s66
      %p72 = scmp.eq.s32.totalorder %s13, 0
      %p73 = por %p71, %p72
      %p74 = scmp.ne.s32.totalorder %s63, %s66
      %p75 = scmp.eq.s32.totalorder %s18, 1
      %p76 = por %p74, %p75
      %p77 = scmp.ne.s32.totalorder %s66, %s67
      %p78 = scmp.eq.s32.totalorder %s18, 0
      %p79 = por %p77, %p78
      %p80 = scmp.ne.s32.totalorder %s66, %s67
      %p81 = scmp.eq.s32.totalorder %s19, 1
      %p82 = por %p80, %p81
      %p84 = scmp.ne.s32.totalorder %s67, %s83
      %p85 = scmp.eq.s32.totalorder %s19, 0
      %p86 = por %p84, %p85
      %s87 = ssub.s32 %s20, %s32
      %p88 = scmp.eq.s32.totalorder %s87, 0
      %s90 = sadd.s32 %s89, 1
      %s91 = scalar_select %p88, %s89, %s90
      %p94 = pneg %p88
      %p95 = scmp.eq.s32.totalorder %s13, 1
      %p96 = por %p94, %p95
      %p97 = scmp.ne.s32.totalorder %s89, %s92
      %p98 = scmp.eq.s32.totalorder %s13, 0
      %p99 = por %p97, %p98
      %p100 = scmp.ne.s32.totalorder %s89, %s92
      %p101 = scmp.eq.s32.totalorder %s18, 1
      %p102 = por %p100, %p101
      %p103 = scmp.ne.s32.totalorder %s92, %s93
      %p104 = scmp.eq.s32.totalorder %s18, 0
      %p105 = por %p103, %p104
      %p106 = scmp.ne.s32.totalorder %s92, %s93
      %p107 = scmp.eq.s32.totalorder %s19, 1
      %p108 = por %p106, %p107
      %p110 = scmp.ne.s32.totalorder %s93, %s109
      %p111 = scmp.eq.s32.totalorder %s19, 0
      %p112 = por %p110, %p111
      %p113 = scmp.le.s32.totalorder 1, %s13
      %p114 = scmp.lt.s32.totalorder %s13, 3
      %p115 = pnand %p113, %p114
      %p116 = pneg %p115
      // Predicated region
      $region9: #{tpu_custom_call.1} parent=5 // pred_check
        _
      $region10: #{tpu_custom_call.1} parent=5 // pred_check_branch
        %118 = sbr.rel (%p115) target = $region12
      $region11: #{tpu_custom_call.1} parent=5 // pred_region
        %s119 = ssub.s32 %s13, 1
        // Predicated region
        $region13: #{tpu_custom_call.1} parent=11 // pred_check
          %p120 = pneg %p51
        $region14: #{tpu_custom_call.1} parent=11 // pred_check_branch
          %122 = sbr.rel (%p120) target = $region16
        $region15: #{tpu_custom_call.1} parent=11 // pred_region
          %p123 = scmp.lt.s32.totalorder %s22, 0
          %s124 = scalar_select %p123, %s22, 0
          %s125 = smul.addr %s124, 8
          %s126 = smul.addr %s125, 8
          %s127 = scalar_lea.vmem %s0, %s126
        $region16: #{tpu_custom_call.1} parent=11 // pred_fallthru
          _
      $region12: #{tpu_custom_call.1} parent=5 // pred_fallthru
        _
      %p128 = scmp.lt.s32.totalorder %s13, 2
      // Predicated region
      $region17: #{tpu_custom_call.1} parent=5 // pred_check
        %p129 = pneg %p128
      $region18: #{tpu_custom_call.1} parent=5 // pred_check_branch
        %131 = sbr.rel (%p129) target = $region20
      $region19: #{tpu_custom_call.1} parent=5 // pred_region
        // Predicated region
        $region21: #{tpu_custom_call.1} parent=19 // pred_check
          %p132 = pneg %p73
        $region22: #{tpu_custom_call.1} parent=19 // pred_check_branch
          %134 = sbr.rel (%p132) target = $region24
        $region23: #{tpu_custom_call.1} parent=19 // pred_region
          %p135 = scmp.lt.s32.totalorder %s21, 1
          %s136 = scalar_select %p135, %s21, 1
          %p137 = scmp.lt.s32.totalorder %s20, 0
          %s138 = scalar_select %p137, %s20, 0
          %s139 = sadd.s32 %s138, %s136
          %s140 = smul.addr %s139, 8
          %s141 = scalar_lea.vmem %s1, %s140
        $region24: #{tpu_custom_call.1} parent=19 // pred_fallthru
          _
      $region20: #{tpu_custom_call.1} parent=5 // pred_fallthru
        _
      %p142 = scmp.le.s32.totalorder 1, %s13
      %p143 = scmp.lt.s32.totalorder %s13, 3
      %p144 = pnand %p142, %p143
      %p145 = pneg %p144
      // Predicated region
      $region25: #{tpu_custom_call.1} parent=5 // pred_check
        _
      $region26: #{tpu_custom_call.1} parent=5 // pred_check_branch
        %147 = sbr.rel (%p144) target = $region28
      $region27: #{tpu_custom_call.1} parent=5 // pred_region
        %s148 = ssub.s32 %s13, 1
        %p149 = scmp.lt.s32.totalorder %s22, 0
        %s150 = scalar_select %p149, %s22, 0
        %s151 = smul.addr %s150, 8
        %s152 = smul.addr %s151, 8
        %s153 = scalar_lea.vmem %s0, %s152
        %p154 = pneg %p51
        %p155 = pneg %p48
        %p156 = scmp.lt.s32.totalorder %s23, 1
        %s157 = scalar_select %p156, %s23, 1
        %p158 = scmp.lt.s32.totalorder %s22, 0
        %s159 = scalar_select %p158, %s22, 0
        %s160 = sadd.s32 %s159, %s157
        %s161 = smul.addr %s160, 8
        %s162 = scalar_lea.vmem %s1, %s161
        %p163 = pneg %p79
        %p164 = pneg %p76
        %p165 = pneg %p105
        %p166 = pneg %p102
        %p167 = scmp.lt.s32.totalorder %s22, 0
        %s168 = scalar_select %p167, %s22, 0
        %s169 = smul.addr %s168, 8
        %s170 = smul.addr %s169, 8
        %s171 = scalar_lea.vmem %s0, %s170
        %p172 = scmp.lt.s32.totalorder %s23, 1
        %s173 = scalar_select %p172, %s23, 1
        %p174 = scmp.lt.s32.totalorder %s22, 0
        %s175 = scalar_select %p174, %s22, 0
        %s176 = sadd.s32 %s175, %s173
        %s177 = smul.addr %s176, 8
        %s178 = scalar_lea.vmem %s1, %s177
        %p179 = scmp.eq.s32.totalorder %s23, 0
        // Predicated region
        $region29: #{tpu_custom_call.1} parent=27 // pred_check
          %p180 = pneg %p179
        $region30: #{tpu_custom_call.1} parent=27 // pred_check_branch
          %182 = sbr.rel (%p180) target = $region32
        $region31: #{tpu_custom_call.1} parent=27 // pred_region
          %p184 = scmp.lt.u32.totalorder 64, 8
          %p185 = pneg %p184
          // Predicated region
          $region33: #{tpu_custom_call.1} parent=31 // pred_check
            _
          $region34: #{tpu_custom_call.1} parent=31 // pred_check_branch
            %187 = sbr.rel (%p184) target = $region36
          $region35: #{tpu_custom_call.1} parent=31 // pred_region
            %s202 = sand.u32 64, 7
            %p203 = scmp.eq.s32.totalorder %s202, 0
            // Predicated region
            $region48: #{tpu_custom_call.1} parent=35 // pred_check
              %p204 = pneg %p203
            $region49: #{tpu_custom_call.1} parent=35 // pred_check_branch
              %206 = sbr.rel (%p204) target = $region51
            $region50: #{tpu_custom_call.1} parent=35 // pred_region
              loop: start=0, step=1, limit=1
              $region52: #{tpu_custom_call.1} parent=50 // loop_pre_header
                _
              $region53: #{tpu_custom_call.1} parent=50 // loop_header
                %s208 = sphi 0, %s212
                %p209 = scmp.ge.s32.totalorder %s208, 1
                %s213 = sphi %s2, %s2
                %s214 = sphi [#allocation5], [#allocation5]
              $region54: #{tpu_custom_call.1} parent=50 // loop_header_branch
                %211 = sbr.rel (%p209) target = $region58
              $region55: #{tpu_custom_call.1} parent=50 // loop_body
                %v215 = vld [vmem:[%s213] sm:$0xff]
                %216 = vst [vmem:[%s214] sm:$0xff] %v215
                %v217 = vld [vmem:[%s213 + $0x8] sm:$0xff]
                %218 = vst [vmem:[%s214 + $0x8] sm:$0xff] %v217
                %v219 = vld [vmem:[%s213 + $0x10] sm:$0xff]
                %220 = vst [vmem:[%s214 + $0x10] sm:$0xff] %v219
                %v221 = vld [vmem:[%s213 + $0x18] sm:$0xff]
                %222 = vst [vmem:[%s214 + $0x18] sm:$0xff] %v221
                %v223 = vld [vmem:[%s213 + $0x20] sm:$0xff]
                %224 = vst [vmem:[%s214 + $0x20] sm:$0xff] %v223
                %v225 = vld [vmem:[%s213 + $0x28] sm:$0xff]
                %226 = vst [vmem:[%s214 + $0x28] sm:$0xff] %v225
                %v227 = vld [vmem:[%s213 + $0x30] sm:$0xff]
                %228 = vst [vmem:[%s214 + $0x30] sm:$0xff] %v227
                %v229 = vld [vmem:[%s213 + $0x38] sm:$0xff]
                %230 = vst [vmem:[%s214 + $0x38] sm:$0xff] %v229
              $region56: #{tpu_custom_call.1} parent=50 // loop_footer
                %s212 = sadd.s32 1, %s208
              $region57: #{tpu_custom_call.1} parent=50 // loop_footer_branch
                %207 = sbr.rel target = $region53
              $region58: #{tpu_custom_call.1} parent=50 // loop_exit
                _
            $region51: #{tpu_custom_call.1} parent=35 // pred_fallthru
              _
            %p231 = pneg %p203
            // Predicated region
            $region59: #{tpu_custom_call.1} parent=35 // pred_check
              _
            $region60: #{tpu_custom_call.1} parent=35 // pred_check_branch
              %233 = sbr.rel (%p203) target = $region62
            $region61: #{tpu_custom_call.1} parent=35 // pred_region
              %s234 = sand.u32 64, 7
            $region62: #{tpu_custom_call.1} parent=35 // pred_fallthru
              _
          $region36: #{tpu_custom_call.1} parent=31 // pred_fallthru
            _
          // Predicated region
          $region37: #{tpu_custom_call.1} parent=31 // pred_check
            %p188 = pneg %p184
          $region38: #{tpu_custom_call.1} parent=31 // pred_check_branch
            %190 = sbr.rel (%p188) target = $region40
          $region39: #{tpu_custom_call.1} parent=31 // pred_region
            %s191 = sshllo.u32 0, 64
            loop: start=0, step=1, limit=1
            $region41: #{tpu_custom_call.1} parent=39 // loop_pre_header
              _
            $region42: #{tpu_custom_call.1} parent=39 // loop_header
              %s193 = sphi 0, %s197
              %p194 = scmp.ge.s32.totalorder %s193, 1
              %s198 = sphi %s2, %s2
              %s199 = sphi [#allocation5], [#allocation5]
            $region43: #{tpu_custom_call.1} parent=39 // loop_header_branch
              %196 = sbr.rel (%p194) target = $region47
            $region44: #{tpu_custom_call.1} parent=39 // loop_body
              %v200 = vld [vmem:[%s198] sm:%s191]
              %201 = vst [vmem:[%s199] sm:%s191] %v200
            $region45: #{tpu_custom_call.1} parent=39 // loop_footer
              %s197 = sadd.s32 1, %s193
            $region46: #{tpu_custom_call.1} parent=39 // loop_footer_branch
              %192 = sbr.rel target = $region42
            $region47: #{tpu_custom_call.1} parent=39 // loop_exit
              _
          $region40: #{tpu_custom_call.1} parent=31 // pred_fallthru
            _
          // Predicated region
          $region63: #{tpu_custom_call.1} parent=31 // pred_check
            _
          $region64: #{tpu_custom_call.1} parent=31 // pred_check_branch
            %237 = sbr.rel (0) target = $region66
          $region65: #{tpu_custom_call.1} parent=31 // pred_region
            %238 = vsyncadd [#allocation9], 1024
          $region66: #{tpu_custom_call.1} parent=31 // pred_fallthru
            _
          %s239 = scalar_lea.sflag [#allocation9], 2
          %p241 = scmp.lt.u32.totalorder 2, 8
          %p242 = pneg %p241
          // Predicated region
          $region67: #{tpu_custom_call.1} parent=31 // pred_check
            _
          $region68: #{tpu_custom_call.1} parent=31 // pred_check_branch
            %244 = sbr.rel (%p241) target = $region70
          $region69: #{tpu_custom_call.1} parent=31 // pred_region
            %s259 = sand.u32 2, 7
            %p260 = scmp.eq.s32.totalorder %s259, 0
            %p261 = pneg %p260
            // Predicated region
            $region82: #{tpu_custom_call.1} parent=69 // pred_check
              _
            $region83: #{tpu_custom_call.1} parent=69 // pred_check_branch
              %263 = sbr.rel (%p260) target = $region85
            $region84: #{tpu_custom_call.1} parent=69 // pred_region
              %s264 = sand.u32 2, 7
              %s265 = ssub.s32 2, %s264
              %s266 = scalar_lea.vmem %s4, %s265
              %s267 = ssub.s32 2, %s264
              %s268 = scalar_lea.vmem [#allocation7], %s267
              %s269 = sshllo.u32 0, %s264
              loop: start=0, step=1, limit=1
              $region86: #{tpu_custom_call.1} parent=84 // loop_pre_header
                _
              $region87: #{tpu_custom_call.1} parent=84 // loop_header
                %s271 = sphi 0, %s275
                %p272 = scmp.ge.s32.totalorder %s271, 1
                %s276 = sphi %s266, %s266
                %s277 = sphi %s268, %s268
              $region88: #{tpu_custom_call.1} parent=84 // loop_header_branch
                %274 = sbr.rel (%p272) target = $region92
              $region89: #{tpu_custom_call.1} parent=84 // loop_body
                %v278 = vld [vmem:[%s276] sm:%s269]
                %279 = vst [vmem:[%s277] sm:%s269] %v278
              $region90: #{tpu_custom_call.1} parent=84 // loop_footer
                %s275 = sadd.s32 1, %s271
              $region91: #{tpu_custom_call.1} parent=84 // loop_footer_branch
                %270 = sbr.rel target = $region87
              $region92: #{tpu_custom_call.1} parent=84 // loop_exit
                _
            $region85: #{tpu_custom_call.1} parent=69 // pred_fallthru
              _
          $region70: #{tpu_custom_call.1} parent=31 // pred_fallthru
            _
          // Predicated region
          $region71: #{tpu_custom_call.1} parent=31 // pred_check
            %p245 = pneg %p241
          $region72: #{tpu_custom_call.1} parent=31 // pred_check_branch
            %247 = sbr.rel (%p245) target = $region74
          $region73: #{tpu_custom_call.1} parent=31 // pred_region
            %s248 = sshllo.u32 0, 2
            loop: start=0, step=1, limit=1
            $region75: #{tpu_custom_call.1} parent=73 // loop_pre_header
              _
            $region76: #{tpu_custom_call.1} parent=73 // loop_header
              %s250 = sphi 0, %s254
              %p251 = scmp.ge.s32.totalorder %s250, 1
              %s255 = sphi %s4, %s4
              %s256 = sphi [#allocation7], [#allocation7]
            $region77: #{tpu_custom_call.1} parent=73 // loop_header_branch
              %253 = sbr.rel (%p251) target = $region81
            $region78: #{tpu_custom_call.1} parent=73 // loop_body
              %v257 = vld [vmem:[%s255] sm:%s248]
              %258 = vst [vmem:[%s256] sm:%s248] %v257
            $region79: #{tpu_custom_call.1} parent=73 // loop_footer
              %s254 = sadd.s32 1, %s250
            $region80: #{tpu_custom_call.1} parent=73 // loop_footer_branch
              %249 = sbr.rel target = $region76
            $region81: #{tpu_custom_call.1} parent=73 // loop_exit
              _
          $region74: #{tpu_custom_call.1} parent=31 // pred_fallthru
            _
          // Predicated region
          $region93: #{tpu_custom_call.1} parent=31 // pred_check
            _
          $region94: #{tpu_custom_call.1} parent=31 // pred_check_branch
            %282 = sbr.rel (0) target = $region96
          $region95: #{tpu_custom_call.1} parent=31 // pred_region
            %283 = vsyncadd %s239, 32
          $region96: #{tpu_custom_call.1} parent=31 // pred_fallthru
            _
          %s284 = scalar_lea.sflag [#allocation9], 1
          // Predicated region
          $region97: #{tpu_custom_call.1} parent=31 // pred_check
            _
          $region98: #{tpu_custom_call.1} parent=31 // pred_check_branch
            %286 = sbr.rel target = $region100
          $region99: #{tpu_custom_call.1} parent=31 // pred_region
            %287 = sst [smem:[#allocation16]] [#allocation15]
            %288 = sst [smem:[#allocation17]] [#allocation14]
          $region100: #{tpu_custom_call.1} parent=31 // pred_fallthru
            _
          %290 = shalt.err (0)
          %s292 = sshll.u32 [#allocation6], 4
          %s293 = int_to_ptr.vmem [resolvable:$true] %s292
          %295 = dma.hbm_to_vmem [thread:$0]  %s3, 1024, %s293, %s284
          %s296 = scalar_lea.sflag [#allocation9], 3
          %p298 = scmp.lt.u32.totalorder 2, 8
          %p299 = pneg %p298
          // Predicated region
          $region101: #{tpu_custom_call.1} parent=31 // pred_check
            _
          $region102: #{tpu_custom_call.1} parent=31 // pred_check_branch
            %301 = sbr.rel (%p298) target = $region104
          $region103: #{tpu_custom_call.1} parent=31 // pred_region
            %s316 = sand.u32 2, 7
            %p317 = scmp.eq.s32.totalorder %s316, 0
            %p318 = pneg %p317
            // Predicated region
            $region116: #{tpu_custom_call.1} parent=103 // pred_check
              _
            $region117: #{tpu_custom_call.1} parent=103 // pred_check_branch
              %320 = sbr.rel (%p317) target = $region119
            $region118: #{tpu_custom_call.1} parent=103 // pred_region
              %s321 = sand.u32 2, 7
              %s322 = ssub.s32 2, %s321
              %s323 = scalar_lea.vmem %s5, %s322
              %s324 = ssub.s32 2, %s321
              %s325 = scalar_lea.vmem [#allocation8], %s324
              %s326 = sshllo.u32 0, %s321
              loop: start=0, step=1, limit=1
              $region120: #{tpu_custom_call.1} parent=118 // loop_pre_header
                _
              $region121: #{tpu_custom_call.1} parent=118 // loop_header
                %s328 = sphi 0, %s332
                %p329 = scmp.ge.s32.totalorder %s328, 1
                %s333 = sphi %s323, %s323
                %s334 = sphi %s325, %s325
              $region122: #{tpu_custom_call.1} parent=118 // loop_header_branch
                %331 = sbr.rel (%p329) target = $region126
              $region123: #{tpu_custom_call.1} parent=118 // loop_body
                %v335 = vld [vmem:[%s333] sm:%s326]
                %336 = vst [vmem:[%s334] sm:%s326] %v335
              $region124: #{tpu_custom_call.1} parent=118 // loop_footer
                %s332 = sadd.s32 1, %s328
              $region125: #{tpu_custom_call.1} parent=118 // loop_footer_branch
                %327 = sbr.rel target = $region121
              $region126: #{tpu_custom_call.1} parent=118 // loop_exit
                _
            $region119: #{tpu_custom_call.1} parent=103 // pred_fallthru
              _
          $region104: #{tpu_custom_call.1} parent=31 // pred_fallthru
            _
          // Predicated region
          $region105: #{tpu_custom_call.1} parent=31 // pred_check
            %p302 = pneg %p298
          $region106: #{tpu_custom_call.1} parent=31 // pred_check_branch
            %304 = sbr.rel (%p302) target = $region108
          $region107: #{tpu_custom_call.1} parent=31 // pred_region
            %s305 = sshllo.u32 0, 2
            loop: start=0, step=1, limit=1
            $region109: #{tpu_custom_call.1} parent=107 // loop_pre_header
              _
            $region110: #{tpu_custom_call.1} parent=107 // loop_header
              %s307 = sphi 0, %s311
              %p308 = scmp.ge.s32.totalorder %s307, 1
              %s312 = sphi %s5, %s5
              %s313 = sphi [#allocation8], [#allocation8]
            $region111: #{tpu_custom_call.1} parent=107 // loop_header_branch
              %310 = sbr.rel (%p308) target = $region115
            $region112: #{tpu_custom_call.1} parent=107 // loop_body
              %v314 = vld [vmem:[%s312] sm:%s305]
              %315 = vst [vmem:[%s313] sm:%s305] %v314
            $region113: #{tpu_custom_call.1} parent=107 // loop_footer
              %s311 = sadd.s32 1, %s307
            $region114: #{tpu_custom_call.1} parent=107 // loop_footer_branch
              %306 = sbr.rel target = $region110
            $region115: #{tpu_custom_call.1} parent=107 // loop_exit
              _
          $region108: #{tpu_custom_call.1} parent=31 // pred_fallthru
            _
          // Predicated region
          $region127: #{tpu_custom_call.1} parent=31 // pred_check
            _
          $region128: #{tpu_custom_call.1} parent=31 // pred_check_branch
            %339 = sbr.rel (0) target = $region130
          $region129: #{tpu_custom_call.1} parent=31 // pred_region
            %340 = vsyncadd %s296, 32
          $region130: #{tpu_custom_call.1} parent=31 // pred_fallthru
            _
          %s341 = smul.u32 2, 32
          %s342 = smul.u32 %s341, 1
          %s343 = sshll.u32 %s342, 4
          %344 = dma.done [#allocation9], %s343
          %s345 = smul.u32 2, 1
          %s346 = smul.u32 %s345, 1
          %s347 = sshll.u32 %s346, 4
          %348 = dma.done %s239, %s347
          %v349 = vld [vmem:[%s171] sm:$0xff]
          %v350 = vld [vmem:[%s171 + $0x8] sm:$0xff]
          %v351 = vld [vmem:[%s171 + $0x10] sm:$0xff]
          %v352 = vld [vmem:[%s171 + $0x18] sm:$0xff]
          %v353 = vld [vmem:[%s171 + $0x20] sm:$0xff]
          %v354 = vld [vmem:[%s171 + $0x28] sm:$0xff]
          %v355 = vld [vmem:[%s171 + $0x30] sm:$0xff]
          %v356 = vld [vmem:[%s171 + $0x38] sm:$0xff]
          %v357 = vld [vmem:[#allocation5] sm:$0xff]
          %v358 = vld [vmem:[#allocation5 + $0x8] sm:$0xff]
          %v359 = vld [vmem:[#allocation5 + $0x10] sm:$0xff]
          %v360 = vld [vmem:[#allocation5 + $0x18] sm:$0xff]
          %v361 = vld [vmem:[#allocation7] sm:$0x1]
          %v363 = vlaneseq
          %v364 = vshrl.u32 %v363, 7
          %v365 = vsub.s32 0, %v364
          %v366 = vrot.slane %v361, %v365
          %vm368 = vcmask 261120
          %v370 = vsel %vm368, %v349, 0
          %v373 = vsel %vm368, %v350, 0
          %v376 = vsel %vm368, %v351, 0
          %v379 = vsel %vm368, %v352, 0
          %v382 = vsel %vm368, %v353, 0
          %v385 = vsel %vm368, %v354, 0
          %v388 = vsel %vm368, %v355, 0
          %v391 = vsel %vm368, %v356, 0
          %393 = vmatprep.subr.mxu0 0.0
          %394 = vmatpush1.msra.mxu0 %v357
          %395 = vmatprep.subr.mxu0 0.0
          %396 = vmatpush1.msra.mxu0 %v358
          %397 = vmatprep.subr.mxu0 0.0
          %398 = vmatpush1.msra.mxu0 %v359
          %399 = vmatprep.subr.mxu0 0.0
          %400 = vmatpush1.msra.mxu0 %v360
          %401 = vmatprep.subr.mxu0 0.0
          %402 = vmatpush1.msra.mxu0 0.0
          %403 = vmatprep.subr.mxu0 0.0
          %404 = vmatpush1.msra.mxu0 0.0
          %405 = vmatprep.subr.mxu0 0.0
          %406 = vmatpush1.msra.mxu0 0.0
          %407 = vmatprep.subr.mxu0 0.0
          %408 = vmatpush1.msra.mxu0 0.0
          %409 = vmatprep.subr.mxu0 0.0
          %410 = vmatpush1.msra.mxu0 0.0
          %411 = vmatprep.subr.mxu0 0.0
          %412 = vmatpush1.msra.mxu0 0.0
          %413 = vmatprep.subr.mxu0 0.0
          %414 = vmatpush1.msra.mxu0 0.0
          %415 = vmatprep.subr.mxu0 0.0
          %416 = vmatpush1.msra.mxu0 0.0
          %417 = vmatprep.subr.mxu0 0.0
          %418 = vmatpush1.msra.mxu0 0.0
          %419 = vmatprep.subr.mxu0 0.0
          %420 = vmatpush1.msra.mxu0 0.0
          %421 = vmatprep.subr.mxu0 0.0
          %422 = vmatpush1.msra.mxu0 0.0
          %423 = vmatprep.subr.mxu0 0.0
          %424 = vmatpush1.msra.mxu0 0.0
          %425 = vmatprep.subr.mxu0 0.0
          %426 = vmatpush1.msra.mxu0 0.0
          %427 = vmatprep.subr.mxu0 0.0
          %428 = vmatpush1.msra.mxu0 0.0
          %429 = vmatprep.subr.mxu0 0.0
          %430 = vmatpush1.msra.mxu0 0.0
          %431 = vmatprep.subr.mxu0 0.0
          %432 = vmatpush1.msra.mxu0 0.0
          %433 = vmatprep.subr.mxu0 0.0
          %434 = vmatpush1.msra.mxu0 0.0
          %435 = vmatprep.subr.mxu0 0.0
          %436 = vmatpush1.msra.mxu0 0.0
          %437 = vmatprep.subr.mxu0 0.0
          %438 = vmatpush1.msra.mxu0 0.0
          %439 = vmatprep.subr.mxu0 0.0
          %440 = vmatpush1.msra.mxu0 0.0
          %441 = vmatprep.subr.mxu0 0.0
          %442 = vmatpush1.msra.mxu0 0.0
          %443 = vmatprep.subr.mxu0 0.0
          %444 = vmatpush1.msra.mxu0 0.0
          %445 = vmatprep.subr.mxu0 0.0
          %446 = vmatpush1.msra.mxu0 0.0
          %447 = vmatprep.subr.mxu0 0.0
          %448 = vmatpush1.msra.mxu0 0.0
          %449 = vmatprep.subr.mxu0 0.0
          %450 = vmatpush1.msra.mxu0 0.0
          %451 = vmatprep.subr.mxu0 0.0
          %452 = vmatpush1.msra.mxu0 0.0
          %453 = vmatprep.subr.mxu0 0.0
          %454 = vmatpush1.msra.mxu0 0.0
          %455 = vmatprep.subr.mxu0 0.0
          %456 = vmatpush1.msra.mxu0 0.0
          %457 = vmatprep.mubr.f32.mxu0 0.0
          %458 = vmatmul.mubr.f32.gmra.mrb[0].mxu0 %v370
          %v459 = vpop.f32.mrb[0].mxu0
          %v460 = vadd.f32 %v366, %v459
          %v461 = vpop.f32.mrb[0].mxu0
          %462 = vmatprep.mubr.f32.mxu0 0.0
          %463 = vmatmul.mubr.f32.gmra.mrb[0].mxu0 %v373
          %v464 = vpop.f32.mrb[0].mxu0
          %v465 = vadd.f32 %v366, %v464
          %v466 = vpop.f32.mrb[0].mxu0
          %467 = vmatprep.mubr.f32.mxu0 0.0
          %468 = vmatmul.mubr.f32.gmra.mrb[0].mxu0 %v376
          %v469 = vpop.f32.mrb[0].mxu0
          %v470 = vadd.f32 %v366, %v469
          %v471 = vpop.f32.mrb[0].mxu0
          %472 = vmatprep.mubr.f32.mxu0 0.0
          %473 = vmatmul.mubr.f32.gmra.mrb[0].mxu0 %v379
          %v474 = vpop.f32.mrb[0].mxu0
          %v475 = vadd.f32 %v366, %v474
          %v476 = vpop.f32.mrb[0].mxu0
          %477 = vmatprep.mubr.f32.mxu0 0.0
          %478 = vmatmul.mubr.f32.gmra.mrb[0].mxu0 %v382
          %v479 = vpop.f32.mrb[0].mxu0
          %v480 = vadd.f32 %v366, %v479
          %v481 = vpop.f32.mrb[0].mxu0
          %482 = vmatprep.mubr.f32.mxu0 0.0
          %483 = vmatmul.mubr.f32.gmra.mrb[0].mxu0 %v385
          %v484 = vpop.f32.mrb[0].mxu0
          %v485 = vadd.f32 %v366, %v484
          %v486 = vpop.f32.mrb[0].mxu0
          %487 = vmatprep.mubr.f32.mxu0 0.0
          %488 = vmatmul.mubr.f32.gmra.mrb[0].mxu0 %v388
          %v489 = vpop.f32.mrb[0].mxu0
          %v490 = vadd.f32 %v366, %v489
          %v491 = vpop.f32.mrb[0].mxu0
          %492 = vmatprep.mubr.f32.mxu0 0.0
          %493 = vmatmul.mubr.f32.gmra.mrb[0].mxu0 %v391
          %v494 = vpop.f32.mrb[0].mxu0
          %v495 = vadd.f32 %v366, %v494
          %v496 = vpop.f32.mrb[0].mxu0
          %497 = vdwg.mxu0
          %vm498 = vcmask 785408
          %499 = vst.msk [vmem:[#allocation3] sm:$0xff] %vm498, %v460
          %500 = vst.msk [vmem:[#allocation3 + $0x8] sm:$0xff] %vm498, %v465
          %501 = vst.msk [vmem:[#allocation3 + $0x10] sm:$0xff] %vm498, %v470
          %502 = vst.msk [vmem:[#allocation3 + $0x18] sm:$0xff] %vm498, %v475
          %503 = vst.msk [vmem:[#allocation3 + $0x20] sm:$0xff] %vm498, %v480
          %504 = vst.msk [vmem:[#allocation3 + $0x28] sm:$0xff] %vm498, %v485
          %505 = vst.msk [vmem:[#allocation3 + $0x30] sm:$0xff] %vm498, %v490
          %506 = vst.msk [vmem:[#allocation3 + $0x38] sm:$0xff] %vm498, %v495
          %s507 = sshll.u32 %s342, 4
          %508 = dma.done %s284, %s507
          %s509 = sshll.u32 %s346, 4
          %510 = dma.done %s296, %s509
        $region32: #{tpu_custom_call.1} parent=27 // pred_fallthru
          _
        %p511 = scmp.gt.s32.totalorder %s23, 0
        // Predicated region
        $region131: #{tpu_custom_call.1} parent=27 // pred_check
          %p512 = pneg %p511
        $region132: #{tpu_custom_call.1} parent=27 // pred_check_branch
          %514 = sbr.rel (%p512) target = $region134
        $region133: #{tpu_custom_call.1} parent=27 // pred_region
          %v515 = vld [vmem:[#allocation2] sm:$0xff]
          %v516 = vld [vmem:[#allocation2 + $0x8] sm:$0xff]
          %v517 = vld [vmem:[#allocation2 + $0x10] sm:$0xff]
          %v518 = vld [vmem:[#allocation2 + $0x18] sm:$0xff]
          %v519 = vld [vmem:[#allocation2 + $0x20] sm:$0xff]
          %v520 = vld [vmem:[#allocation2 + $0x28] sm:$0xff]
          %v521 = vld [vmem:[#allocation2 + $0x30] sm:$0xff]
          %v522 = vld [vmem:[#allocation2 + $0x38] sm:$0xff]
          %s523 = smul.u32 %s23, 32
          %s524 = scalar_lea.vmem [#allocation5], %s523
          %v525 = vld [vmem:[%s524] sm:$0xff]
          %v526 = vld [vmem:[%s524 + $0x8] sm:$0xff]
          %v527 = vld [vmem:[%s524 + $0x10] sm:$0xff]
          %v528 = vld [vmem:[%s524 + $0x18] sm:$0xff]
          %s529 = scalar_lea.vmem [#allocation7], %s23
          %v530 = vld [vmem:[%s529] sm:$0x1]
          %v532 = vlaneseq
          %v533 = vshrl.u32 %v532, 7
          %v534 = vsub.s32 0, %v533
          %v535 = vrot.slane %v530, %v534
          %vm537 = vcmask 261120
          %v539 = vsel %vm537, %v515, 0
          %v542 = vsel %vm537, %v516, 0
          %v545 = vsel %vm537, %v517, 0
          %v548 = vsel %vm537, %v518, 0
          %v551 = vsel %vm537, %v519, 0
          %v554 = vsel %vm537, %v520, 0
          %v557 = vsel %vm537, %v521, 0
          %v560 = vsel %vm537, %v522, 0
          %562 = vmatprep.subr.mxu0 0.0
          %563 = vmatpush1.msra.mxu0 %v525
          %564 = vmatprep.subr.mxu0 0.0
          %565 = vmatpush1.msra.mxu0 %v526
          %566 = vmatprep.subr.mxu0 0.0
          %567 = vmatpush1.msra.mxu0 %v527
          %568 = vmatprep.subr.mxu0 0.0
          %569 = vmatpush1.msra.mxu0 %v528
          %570 = vmatprep.subr.mxu0 0.0
          %571 = vmatpush1.msra.mxu0 0.0
          %572 = vmatprep.subr.mxu0 0.0
          %573 = vmatpush1.msra.mxu0 0.0
          %574 = vmatprep.subr.mxu0 0.0
          %575 = vmatpush1.msra.mxu0 0.0
          %576 = vmatprep.subr.mxu0 0.0
          %577 = vmatpush1.msra.mxu0 0.0
          %578 = vmatprep.subr.mxu0 0.0
          %579 = vmatpush1.msra.mxu0 0.0
          %580 = vmatprep.subr.mxu0 0.0
          %581 = vmatpush1.msra.mxu0 0.0
          %582 = vmatprep.subr.mxu0 0.0
          %583 = vmatpush1.msra.mxu0 0.0
          %584 = vmatprep.subr.mxu0 0.0
          %585 = vmatpush1.msra.mxu0 0.0
          %586 = vmatprep.subr.mxu0 0.0
          %587 = vmatpush1.msra.mxu0 0.0
          %588 = vmatprep.subr.mxu0 0.0
          %589 = vmatpush1.msra.mxu0 0.0
          %590 = vmatprep.subr.mxu0 0.0
          %591 = vmatpush1.msra.mxu0 0.0
          %592 = vmatprep.subr.mxu0 0.0
          %593 = vmatpush1.msra.mxu0 0.0
          %594 = vmatprep.subr.mxu0 0.0
          %595 = vmatpush1.msra.mxu0 0.0
          %596 = vmatprep.subr.mxu0 0.0
          %597 = vmatpush1.msra.mxu0 0.0
          %598 = vmatprep.subr.mxu0 0.0
          %599 = vmatpush1.msra.mxu0 0.0
          %600 = vmatprep.subr.mxu0 0.0
          %601 = vmatpush1.msra.mxu0 0.0
          %602 = vmatprep.subr.mxu0 0.0
          %603 = vmatpush1.msra.mxu0 0.0
          %604 = vmatprep.subr.mxu0 0.0
          %605 = vmatpush1.msra.mxu0 0.0
          %606 = vmatprep.subr.mxu0 0.0
          %607 = vmatpush1.msra.mxu0 0.0
          %608 = vmatprep.subr.mxu0 0.0
          %609 = vmatpush1.msra.mxu0 0.0
          %610 = vmatprep.subr.mxu0 0.0
          %611 = vmatpush1.msra.mxu0 0.0
          %612 = vmatprep.subr.mxu0 0.0
          %613 = vmatpush1.msra.mxu0 0.0
          %614 = vmatprep.subr.mxu0 0.0
          %615 = vmatpush1.msra.mxu0 0.0
          %616 = vmatprep.subr.mxu0 0.0
          %617 = vmatpush1.msra.mxu0 0.0
          %618 = vmatprep.subr.mxu0 0.0
          %619 = vmatpush1.msra.mxu0 0.0
          %620 = vmatprep.subr.mxu0 0.0
          %621 = vmatpush1.msra.mxu0 0.0
          %622 = vmatprep.subr.mxu0 0.0
          %623 = vmatpush1.msra.mxu0 0.0
          %624 = vmatprep.subr.mxu0 0.0
          %625 = vmatpush1.msra.mxu0 0.0
          %626 = vmatprep.mubr.f32.mxu0 0.0
          %627 = vmatmul.mubr.f32.gmra.mrb[0].mxu0 %v539
          %v628 = vpop.f32.mrb[0].mxu0
          %v629 = vadd.f32 %v535, %v628
          %v630 = vpop.f32.mrb[0].mxu0
          %631 = vmatprep.mubr.f32.mxu0 0.0
          %632 = vmatmul.mubr.f32.gmra.mrb[0].mxu0 %v542
          %v633 = vpop.f32.mrb[0].mxu0
          %v634 = vadd.f32 %v535, %v633
          %v635 = vpop.f32.mrb[0].mxu0
          %636 = vmatprep.mubr.f32.mxu0 0.0
          %637 = vmatmul.mubr.f32.gmra.mrb[0].mxu0 %v545
          %v638 = vpop.f32.mrb[0].mxu0
          %v639 = vadd.f32 %v535, %v638
          %v640 = vpop.f32.mrb[0].mxu0
          %641 = vmatprep.mubr.f32.mxu0 0.0
          %642 = vmatmul.mubr.f32.gmra.mrb[0].mxu0 %v548
          %v643 = vpop.f32.mrb[0].mxu0
          %v644 = vadd.f32 %v535, %v643
          %v645 = vpop.f32.mrb[0].mxu0
          %646 = vmatprep.mubr.f32.mxu0 0.0
          %647 = vmatmul.mubr.f32.gmra.mrb[0].mxu0 %v551
          %v648 = vpop.f32.mrb[0].mxu0
          %v649 = vadd.f32 %v535, %v648
          %v650 = vpop.f32.mrb[0].mxu0
          %651 = vmatprep.mubr.f32.mxu0 0.0
          %652 = vmatmul.mubr.f32.gmra.mrb[0].mxu0 %v554
          %v653 = vpop.f32.mrb[0].mxu0
          %v654 = vadd.f32 %v535, %v653
          %v655 = vpop.f32.mrb[0].mxu0
          %656 = vmatprep.mubr.f32.mxu0 0.0
          %657 = vmatmul.mubr.f32.gmra.mrb[0].mxu0 %v557
          %v658 = vpop.f32.mrb[0].mxu0
          %v659 = vadd.f32 %v535, %v658
          %v660 = vpop.f32.mrb[0].mxu0
          %661 = vmatprep.mubr.f32.mxu0 0.0
          %662 = vmatmul.mubr.f32.gmra.mrb[0].mxu0 %v560
          %v663 = vpop.f32.mrb[0].mxu0
          %v664 = vadd.f32 %v535, %v663
          %v665 = vpop.f32.mrb[0].mxu0
          %666 = vdwg.mxu0
          %vm667 = vcmask 785408
          %668 = vst.msk [vmem:[#allocation3] sm:$0xff] %vm667, %v629
          %669 = vst.msk [vmem:[#allocation3 + $0x8] sm:$0xff] %vm667, %v634
          %670 = vst.msk [vmem:[#allocation3 + $0x10] sm:$0xff] %vm667, %v639
          %671 = vst.msk [vmem:[#allocation3 + $0x18] sm:$0xff] %vm667, %v644
          %672 = vst.msk [vmem:[#allocation3 + $0x20] sm:$0xff] %vm667, %v649
          %673 = vst.msk [vmem:[#allocation3 + $0x28] sm:$0xff] %vm667, %v654
          %674 = vst.msk [vmem:[#allocation3 + $0x30] sm:$0xff] %vm667, %v659
          %675 = vst.msk [vmem:[#allocation3 + $0x38] sm:$0xff] %vm667, %v664
        $region134: #{tpu_custom_call.1} parent=27 // pred_fallthru
          _
        %s676 = smul.u32 %s23, 32
        %s677 = scalar_lea.vmem [#allocation6], %s676
        %v678 = vld [vmem:[%s677] sm:$0xff]
        %v679 = vld [vmem:[%s677 + $0x8] sm:$0xff]
        %v680 = vld [vmem:[%s677 + $0x10] sm:$0xff]
        %v681 = vld [vmem:[%s677 + $0x18] sm:$0xff]
        %s682 = scalar_lea.vmem [#allocation8], %s23
        %v683 = vld [vmem:[%s682] sm:$0x1]
        %v685 = vlaneseq
        %v686 = vshrl.u32 %v685, 7
        %v687 = vsub.s32 0, %v686
        %v688 = vrot.slane %v683, %v687
        %v689 = vld [vmem:[%s178] sm:$0xff]
        %v690 = vld [vmem:[#allocation3] sm:$0xff]
        %vm691 = vcmask 261120
        %v693 = vsel %vm691, %v689, 0
        %695 = vmatprep.subr.mxu0 0.0
        %696 = vmatpush1.msra.mxu0 %v678
        %697 = vmatprep.subr.mxu0 0.0
        %698 = vmatpush1.msra.mxu0 %v679
        %699 = vmatprep.subr.mxu0 0.0
        %700 = vmatpush1.msra.mxu0 %v680
        %701 = vmatprep.subr.mxu0 0.0
        %702 = vmatpush1.msra.mxu0 %v681
        %703 = vmatprep.subr.mxu0 0.0
        %704 = vmatpush1.msra.mxu0 0.0
        %705 = vmatprep.subr.mxu0 0.0
        %706 = vmatpush1.msra.mxu0 0.0
        %707 = vmatprep.subr.mxu0 0.0
        %708 = vmatpush1.msra.mxu0 0.0
        %709 = vmatprep.subr.mxu0 0.0
        %710 = vmatpush1.msra.mxu0 0.0
        %711 = vmatprep.subr.mxu0 0.0
        %712 = vmatpush1.msra.mxu0 0.0
        %713 = vmatprep.subr.mxu0 0.0
        %714 = vmatpush1.msra.mxu0 0.0
        %715 = vmatprep.subr.mxu0 0.0
        %716 = vmatpush1.msra.mxu0 0.0
        %717 = vmatprep.subr.mxu0 0.0
        %718 = vmatpush1.msra.mxu0 0.0
        %719 = vmatprep.subr.mxu0 0.0
        %720 = vmatpush1.msra.mxu0 0.0
        %721 = vmatprep.subr.mxu0 0.0
        %722 = vmatpush1.msra.mxu0 0.0
        %723 = vmatprep.subr.mxu0 0.0
        %724 = vmatpush1.msra.mxu0 0.0
        %725 = vmatprep.subr.mxu0 0.0
        %726 = vmatpush1.msra.mxu0 0.0
        %727 = vmatprep.subr.mxu0 0.0
        %728 = vmatpush1.msra.mxu0 0.0
        %729 = vmatprep.subr.mxu0 0.0
        %730 = vmatpush1.msra.mxu0 0.0
        %731 = vmatprep.subr.mxu0 0.0
        %732 = vmatpush1.msra.mxu0 0.0
        %733 = vmatprep.subr.mxu0 0.0
        %734 = vmatpush1.msra.mxu0 0.0
        %735 = vmatprep.subr.mxu0 0.0
        %736 = vmatpush1.msra.mxu0 0.0
        %737 = vmatprep.subr.mxu0 0.0
        %738 = vmatpush1.msra.mxu0 0.0
        %739 = vmatprep.subr.mxu0 0.0
        %740 = vmatpush1.msra.mxu0 0.0
        %741 = vmatprep.subr.mxu0 0.0
        %742 = vmatpush1.msra.mxu0 0.0
        %743 = vmatprep.subr.mxu0 0.0
        %744 = vmatpush1.msra.mxu0 0.0
        %745 = vmatprep.subr.mxu0 0.0
        %746 = vmatpush1.msra.mxu0 0.0
        %747 = vmatprep.subr.mxu0 0.0
        %748 = vmatpush1.msra.mxu0 0.0
        %749 = vmatprep.subr.mxu0 0.0
        %750 = vmatpush1.msra.mxu0 0.0
        %751 = vmatprep.subr.mxu0 0.0
        %752 = vmatpush1.msra.mxu0 0.0
        %753 = vmatprep.subr.mxu0 0.0
        %754 = vmatpush1.msra.mxu0 0.0
        %755 = vmatprep.subr.mxu0 0.0
        %756 = vmatpush1.msra.mxu0 0.0
        %757 = vmatprep.subr.mxu0 0.0
        %758 = vmatpush1.msra.mxu0 0.0
        %759 = vmatprep.mubr.f32.mxu0 0.0
        %760 = vmatmul.mubr.f32.gmra.mrb[0].mxu0 %v693
        %v761 = vpop.f32.mrb[0].mxu0
        %v762 = vadd.f32 0.0, %v761
        %v763 = vpop.f32.mrb[0].mxu0
        %764 = vdwg.mxu0
        %v765 = vadd.f32 %v690, %v762
        %v766 = vxor.u32 %v765, 2147483648
        %v767 = vmul.f32 %v766, 1.442695
        %v768 = vpow.pop %v767
        %v769 = vadd.f32 %v768, 1.0
        %v770 = vrcp.pop %v769
        %v771 = vmul.f32 1.0, %v770
        %772 = vrot.lane.b32.xlu0 %v688, 64
        %v773 = vpop.permute.xlu0 %772
        %v775 = vadd.f32 %v762, %v773
        %777 = vrot.lane.b32.xlu0 %v775, 64
        %v778 = vpop.permute.xlu0 %777
        %v780 = vmul.f32 %v771, %v778
        %782 = vrot.lane.b32.xlu0 %v780, 64
        %v783 = vpop.permute.xlu0 %782
        %v785 = vadd.f32 %v690, %v783
        %v786 = vtanh.pop %v785
        %v787 = vsub.f32 1.0, %v771
        %789 = vrot.lane.b32.xlu0 %v786, 96
        %v790 = vpop.permute.xlu0 %789
        %v792 = vmul.f32 %v787, %v790
        %793 = vrot.lane.b32.xlu0 %v689, 32
        %v794 = vpop.permute.xlu0 %793
        %v796 = vmul.f32 %v771, %v794
        %v797 = vadd.f32 %v792, %v796
        %p798 = scmp.lt.s32.totalorder %s23, 1
        // Predicated region
        $region135: #{tpu_custom_call.1} parent=27 // pred_check
          %p799 = pneg %p798
        $region136: #{tpu_custom_call.1} parent=27 // pred_check_branch
          %801 = sbr.rel (%p799) target = $region138
        $region137: #{tpu_custom_call.1} parent=27 // pred_region
          %803 = vrot.lane.b32.xlu0 %v797, 96
          %v804 = vpop.permute.xlu0 %803
          %806 = vst.msk [vmem:[#allocation2] sm:$0xff] %vm691, %v804
        $region138: #{tpu_custom_call.1} parent=27 // pred_fallthru
          _
        %v807 = vld [vmem:[#allocation3 + $0x8] sm:$0xff]
        %809 = vrot.lane.b32.xlu0 %v797, 96
        %v810 = vpop.permute.xlu0 %809
        %v811 = vsel %vm691, %v810, 0
        %813 = vmatprep.subr.mxu0 0.0
        %814 = vmatpush1.msra.mxu0 %v678
        %815 = vmatprep.subr.mxu0 0.0
        %816 = vmatpush1.msra.mxu0 %v679
        %817 = vmatprep.subr.mxu0 0.0
        %818 = vmatpush1.msra.mxu0 %v680
        %819 = vmatprep.subr.mxu0 0.0
        %820 = vmatpush1.msra.mxu0 %v681
        %821 = vmatprep.subr.mxu0 0.0
        %822 = vmatpush1.msra.mxu0 0.0
        %823 = vmatprep.subr.mxu0 0.0
        %824 = vmatpush1.msra.mxu0 0.0
        %825 = vmatprep.subr.mxu0 0.0
        %826 = vmatpush1.msra.mxu0 0.0
        %827 = vmatprep.subr.mxu0 0.0
        %828 = vmatpush1.msra.mxu0 0.0
        %829 = vmatprep.subr.mxu0 0.0
        %830 = vmatpush1.msra.mxu0 0.0
        %831 = vmatprep.subr.mxu0 0.0
        %832 = vmatpush1.msra.mxu0 0.0
        %833 = vmatprep.subr.mxu0 0.0
        %834 = vmatpush1.msra.mxu0 0.0
        %835 = vmatprep.subr.mxu0 0.0
        %836 = vmatpush1.msra.mxu0 0.0
        %837 = vmatprep.subr.mxu0 0.0
        %838 = vmatpush1.msra.mxu0 0.0
        %839 = vmatprep.subr.mxu0 0.0
        %840 = vmatpush1.msra.mxu0 0.0
        %841 = vmatprep.subr.mxu0 0.0
        %842 = vmatpush1.msra.mxu0 0.0
        %843 = vmatprep.subr.mxu0 0.0
        %844 = vmatpush1.msra.mxu0 0.0
        %845 = vmatprep.subr.mxu0 0.0
        %846 = vmatpush1.msra.mxu0 0.0
        %847 = vmatprep.subr.mxu0 0.0
        %848 = vmatpush1.msra.mxu0 0.0
        %849 = vmatprep.subr.mxu0 0.0
        %850 = vmatpush1.msra.mxu0 0.0
        %851 = vmatprep.subr.mxu0 0.0
        %852 = vmatpush1.msra.mxu0 0.0
        %853 = vmatprep.subr.mxu0 0.0
        %854 = vmatpush1.msra.mxu0 0.0
        %855 = vmatprep.subr.mxu0 0.0
        %856 = vmatpush1.msra.mxu0 0.0
        %857 = vmatprep.subr.mxu0 0.0
        %858 = vmatpush1.msra.mxu0 0.0
        %859 = vmatprep.subr.mxu0 0.0
        %860 = vmatpush1.msra.mxu0 0.0
        %861 = vmatprep.subr.mxu0 0.0
        %862 = vmatpush1.msra.mxu0 0.0
        %863 = vmatprep.subr.mxu0 0.0
        %864 = vmatpush1.msra.mxu0 0.0
        %865 = vmatprep.subr.mxu0 0.0
        %866 = vmatpush1.msra.mxu0 0.0
        %867 = vmatprep.subr.mxu0 0.0
        %868 = vmatpush1.msra.mxu0 0.0
        %869 = vmatprep.subr.mxu0 0.0
        %870 = vmatpush1.msra.mxu0 0.0
        %871 = vmatprep.subr.mxu0 0.0
        %872 = vmatpush1.msra.mxu0 0.0
        %873 = vmatprep.subr.mxu0 0.0
        %874 = vmatpush1.msra.mxu0 0.0
        %875 = vmatprep.subr.mxu0 0.0
        %876 = vmatpush1.msra.mxu0 0.0
        %877 = vmatprep.mubr.f32.mxu0 0.0
        %878 = vmatmul.mubr.f32.gmra.mrb[0].mxu0 %v811
        %v879 = vpop.f32.mrb[0].mxu0
        %v880 = vadd.f32 0.0, %v879
        %v881 = vpop.f32.mrb[0].mxu0
        %882 = vdwg.mxu0
        %v883 = vadd.f32 %v807, %v880
        %v884 = vxor.u32 %v883, 2147483648
        %v885 = vmul.f32 %v884, 1.442695
        %v886 = vpow.pop %v885
        %v887 = vadd.f32 %v886, 1.0
        %v888 = vrcp.pop %v887
        %v889 = vmul.f32 1.0, %v888
        %v890 = vadd.f32 %v880, %v773
        %892 = vrot.lane.b32.xlu0 %v890, 64
        %v893 = vpop.permute.xlu0 %892
        %v895 = vmul.f32 %v889, %v893
        %897 = vrot.lane.b32.xlu0 %v895, 64
        %v898 = vpop.permute.xlu0 %897
        %v900 = vadd.f32 %v807, %v898
        %v901 = vtanh.pop %v900
        %v902 = vsub.f32 1.0, %v889
        %904 = vrot.lane.b32.xlu0 %v901, 96
        %v905 = vpop.permute.xlu0 %904
        %v907 = vmul.f32 %v902, %v905
        %v908 = vmul.f32 %v889, %v797
        %v909 = vadd.f32 %v907, %v908
        // Predicated region
        $region139: #{tpu_custom_call.1} parent=27 // pred_check
          %p910 = pneg %p798
        $region140: #{tpu_custom_call.1} parent=27 // pred_check_branch
          %912 = sbr.rel (%p910) target = $region142
        $region141: #{tpu_custom_call.1} parent=27 // pred_region
          %914 = vrot.lane.b32.xlu0 %v909, 96
          %v915 = vpop.permute.xlu0 %914
          %917 = vst.msk [vmem:[#allocation2 + $0x8] sm:$0xff] %vm691, %v915
        $region142: #{tpu_custom_call.1} parent=27 // pred_fallthru
          _
        %v918 = vld [vmem:[#allocation3 + $0x10] sm:$0xff]
        %920 = vrot.lane.b32.xlu0 %v909, 96
        %v921 = vpop.permute.xlu0 %920
        %v922 = vsel %vm691, %v921, 0
        %924 = vmatprep.subr.mxu0 0.0
        %925 = vmatpush1.msra.mxu0 %v678
        %926 = vmatprep.subr.mxu0 0.0
        %927 = vmatpush1.msra.mxu0 %v679
        %928 = vmatprep.subr.mxu0 0.0
        %929 = vmatpush1.msra.mxu0 %v680
        %930 = vmatprep.subr.mxu0 0.0
        %931 = vmatpush1.msra.mxu0 %v681
        %932 = vmatprep.subr.mxu0 0.0
        %933 = vmatpush1.msra.mxu0 0.0
        %934 = vmatprep.subr.mxu0 0.0
        %935 = vmatpush1.msra.mxu0 0.0
        %936 = vmatprep.subr.mxu0 0.0
        %937 = vmatpush1.msra.mxu0 0.0
        %938 = vmatprep.subr.mxu0 0.0
        %939 = vmatpush1.msra.mxu0 0.0
        %940 = vmatprep.subr.mxu0 0.0
        %941 = vmatpush1.msra.mxu0 0.0
        %942 = vmatprep.subr.mxu0 0.0
        %943 = vmatpush1.msra.mxu0 0.0
        %944 = vmatprep.subr.mxu0 0.0
        %945 = vmatpush1.msra.mxu0 0.0
        %946 = vmatprep.subr.mxu0 0.0
        %947 = vmatpush1.msra.mxu0 0.0
        %948 = vmatprep.subr.mxu0 0.0
        %949 = vmatpush1.msra.mxu0 0.0
        %950 = vmatprep.subr.mxu0 0.0
        %951 = vmatpush1.msra.mxu0 0.0
        %952 = vmatprep.subr.mxu0 0.0
        %953 = vmatpush1.msra.mxu0 0.0
        %954 = vmatprep.subr.mxu0 0.0
        %955 = vmatpush1.msra.mxu0 0.0
        %956 = vmatprep.subr.mxu0 0.0
        %957 = vmatpush1.msra.mxu0 0.0
        %958 = vmatprep.subr.mxu0 0.0
        %959 = vmatpush1.msra.mxu0 0.0
        %960 = vmatprep.subr.mxu0 0.0
        %961 = vmatpush1.msra.mxu0 0.0
        %962 = vmatprep.subr.mxu0 0.0
        %963 = vmatpush1.msra.mxu0 0.0
        %964 = vmatprep.subr.mxu0 0.0
        %965 = vmatpush1.msra.mxu0 0.0
        %966 = vmatprep.subr.mxu0 0.0
        %967 = vmatpush1.msra.mxu0 0.0
        %968 = vmatprep.subr.mxu0 0.0
        %969 = vmatpush1.msra.mxu0 0.0
        %970 = vmatprep.subr.mxu0 0.0
        %971 = vmatpush1.msra.mxu0 0.0
        %972 = vmatprep.subr.mxu0 0.0
        %973 = vmatpush1.msra.mxu0 0.0
        %974 = vmatprep.subr.mxu0 0.0
        %975 = vmatpush1.msra.mxu0 0.0
        %976 = vmatprep.subr.mxu0 0.0
        %977 = vmatpush1.msra.mxu0 0.0
        %978 = vmatprep.subr.mxu0 0.0
        %979 = vmatpush1.msra.mxu0 0.0
        %980 = vmatprep.subr.mxu0 0.0
        %981 = vmatpush1.msra.mxu0 0.0
        %982 = vmatprep.subr.mxu0 0.0
        %983 = vmatpush1.msra.mxu0 0.0
        %984 = vmatprep.subr.mxu0 0.0
        %985 = vmatpush1.msra.mxu0 0.0
        %986 = vmatprep.subr.mxu0 0.0
        %987 = vmatpush1.msra.mxu0 0.0
        %988 = vmatprep.mubr.f32.mxu0 0.0
        %989 = vmatmul.mubr.f32.gmra.mrb[0].mxu0 %v922
        %v990 = vpop.f32.mrb[0].mxu0
        %v991 = vadd.f32 0.0, %v990
        %v992 = vpop.f32.mrb[0].mxu0
        %993 = vdwg.mxu0
        %v994 = vadd.f32 %v918, %v991
        %v995 = vxor.u32 %v994, 2147483648
        %v996 = vmul.f32 %v995, 1.442695
        %v997 = vpow.pop %v996
        %v998 = vadd.f32 %v997, 1.0
        %v999 = vrcp.pop %v998
        %v1000 = vmul.f32 1.0, %v999
        %v1001 = vadd.f32 %v991, %v773
        %1003 = vrot.lane.b32.xlu0 %v1001, 64
        %v1004 = vpop.permute.xlu0 %1003
        %v1006 = vmul.f32 %v1000, %v1004
        %1008 = vrot.lane.b32.xlu0 %v1006, 64
        %v1009 = vpop.permute.xlu0 %1008
        %v1011 = vadd.f32 %v918, %v1009
        %v1012 = vtanh.pop %v1011
        %v1013 = vsub.f32 1.0, %v1000
        %1015 = vrot.lane.b32.xlu0 %v1012, 96
        %v1016 = vpop.permute.xlu0 %1015
        %v1018 = vmul.f32 %v1013, %v1016
        %v1019 = vmul.f32 %v1000, %v909
        %v1020 = vadd.f32 %v1018, %v1019
        // Predicated region
        $region143: #{tpu_custom_call.1} parent=27 // pred_check
          %p1021 = pneg %p798
        $region144: #{tpu_custom_call.1} parent=27 // pred_check_branch
          %1023 = sbr.rel (%p1021) target = $region146
        $region145: #{tpu_custom_call.1} parent=27 // pred_region
          %1025 = vrot.lane.b32.xlu0 %v1020, 96
          %v1026 = vpop.permute.xlu0 %1025
          %1028 = vst.msk [vmem:[#allocation2 + $0x10] sm:$0xff] %vm691, %v1026
        $region146: #{tpu_custom_call.1} parent=27 // pred_fallthru
          _
        %v1029 = vld [vmem:[#allocation3 + $0x18] sm:$0xff]
        %1031 = vrot.lane.b32.xlu0 %v1020, 96
        %v1032 = vpop.permute.xlu0 %1031
        %v1033 = vsel %vm691, %v1032, 0
        %1035 = vmatprep.subr.mxu0 0.0
        %1036 = vmatpush1.msra.mxu0 %v678
        %1037 = vmatprep.subr.mxu0 0.0
        %1038 = vmatpush1.msra.mxu0 %v679
        %1039 = vmatprep.subr.mxu0 0.0
        %1040 = vmatpush1.msra.mxu0 %v680
        %1041 = vmatprep.subr.mxu0 0.0
        %1042 = vmatpush1.msra.mxu0 %v681
        %1043 = vmatprep.subr.mxu0 0.0
        %1044 = vmatpush1.msra.mxu0 0.0
        %1045 = vmatprep.subr.mxu0 0.0
        %1046 = vmatpush1.msra.mxu0 0.0
        %1047 = vmatprep.subr.mxu0 0.0
        %1048 = vmatpush1.msra.mxu0 0.0
        %1049 = vmatprep.subr.mxu0 0.0
        %1050 = vmatpush1.msra.mxu0 0.0
        %1051 = vmatprep.subr.mxu0 0.0
        %1052 = vmatpush1.msra.mxu0 0.0
        %1053 = vmatprep.subr.mxu0 0.0
        %1054 = vmatpush1.msra.mxu0 0.0
        %1055 = vmatprep.subr.mxu0 0.0
        %1056 = vmatpush1.msra.mxu0 0.0
        %1057 = vmatprep.subr.mxu0 0.0
        %1058 = vmatpush1.msra.mxu0 0.0
        %1059 = vmatprep.subr.mxu0 0.0
        %1060 = vmatpush1.msra.mxu0 0.0
        %1061 = vmatprep.subr.mxu0 0.0
        %1062 = vmatpush1.msra.mxu0 0.0
        %1063 = vmatprep.subr.mxu0 0.0
        %1064 = vmatpush1.msra.mxu0 0.0
        %1065 = vmatprep.subr.mxu0 0.0
        %1066 = vmatpush1.msra.mxu0 0.0
        %1067 = vmatprep.subr.mxu0 0.0
        %1068 = vmatpush1.msra.mxu0 0.0
        %1069 = vmatprep.subr.mxu0 0.0
        %1070 = vmatpush1.msra.mxu0 0.0
        %1071 = vmatprep.subr.mxu0 0.0
        %1072 = vmatpush1.msra.mxu0 0.0
        %1073 = vmatprep.subr.mxu0 0.0
        %1074 = vmatpush1.msra.mxu0 0.0
        %1075 = vmatprep.subr.mxu0 0.0
        %1076 = vmatpush1.msra.mxu0 0.0
        %1077 = vmatprep.subr.mxu0 0.0
        %1078 = vmatpush1.msra.mxu0 0.0
        %1079 = vmatprep.subr.mxu0 0.0
        %1080 = vmatpush1.msra.mxu0 0.0
        %1081 = vmatprep.subr.mxu0 0.0
        %1082 = vmatpush1.msra.mxu0 0.0
        %1083 = vmatprep.subr.mxu0 0.0
        %1084 = vmatpush1.msra.mxu0 0.0
        %1085 = vmatprep.subr.mxu0 0.0
        %1086 = vmatpush1.msra.mxu0 0.0
        %1087 = vmatprep.subr.mxu0 0.0
        %1088 = vmatpush1.msra.mxu0 0.0
        %1089 = vmatprep.subr.mxu0 0.0
        %1090 = vmatpush1.msra.mxu0 0.0
        %1091 = vmatprep.subr.mxu0 0.0
        %1092 = vmatpush1.msra.mxu0 0.0
        %1093 = vmatprep.subr.mxu0 0.0
        %1094 = vmatpush1.msra.mxu0 0.0
        %1095 = vmatprep.subr.mxu0 0.0
        %1096 = vmatpush1.msra.mxu0 0.0
        %1097 = vmatprep.subr.mxu0 0.0
        %1098 = vmatpush1.msra.mxu0 0.0
        %1099 = vmatprep.mubr.f32.mxu0 0.0
        %1100 = vmatmul.mubr.f32.gmra.mrb[0].mxu0 %v1033
        %v1101 = vpop.f32.mrb[0].mxu0
        %v1102 = vadd.f32 0.0, %v1101
        %v1103 = vpop.f32.mrb[0].mxu0
        %1104 = vdwg.mxu0
        %v1105 = vadd.f32 %v1029, %v1102
        %v1106 = vxor.u32 %v1105, 2147483648
        %v1107 = vmul.f32 %v1106, 1.442695
        %v1108 = vpow.pop %v1107
        %v1109 = vadd.f32 %v1108, 1.0
        %v1110 = vrcp.pop %v1109
        %v1111 = vmul.f32 1.0, %v1110
        %v1112 = vadd.f32 %v1102, %v773
        %1114 = vrot.lane.b32.xlu0 %v1112, 64
        %v1115 = vpop.permute.xlu0 %1114
        %v1117 = vmul.f32 %v1111, %v1115
        %1119 = vrot.lane.b32.xlu0 %v1117, 64
        %v1120 = vpop.permute.xlu0 %1119
        %v1122 = vadd.f32 %v1029, %v1120
        %v1123 = vtanh.pop %v1122
        %v1124 = vsub.f32 1.0, %v1111
        %1126 = vrot.lane.b32.xlu0 %v1123, 96
        %v1127 = vpop.permute.xlu0 %1126
        %v1129 = vmul.f32 %v1124, %v1127
        %v1130 = vmul.f32 %v1111, %v1020
        %v1131 = vadd.f32 %v1129, %v1130
        // Predicated region
        $region147: #{tpu_custom_call.1} parent=27 // pred_check
          %p1132 = pneg %p798
        $region148: #{tpu_custom_call.1} parent=27 // pred_check_branch
          %1134 = sbr.rel (%p1132) target = $region150
        $region149: #{tpu_custom_call.1} parent=27 // pred_region
          %1136 = vrot.lane.b32.xlu0 %v1131, 96
          %v1137 = vpop.permute.xlu0 %1136
          %1139 = vst.msk [vmem:[#allocation2 + $0x18] sm:$0xff] %vm691, %v1137
        $region150: #{tpu_custom_call.1} parent=27 // pred_fallthru
          _
        %v1140 = vld [vmem:[#allocation3 + $0x20] sm:$0xff]
        %1142 = vrot.lane.b32.xlu0 %v1131, 96
        %v1143 = vpop.permute.xlu0 %1142
        %v1144 = vsel %vm691, %v1143, 0
        %1146 = vmatprep.subr.mxu0 0.0
        %1147 = vmatpush1.msra.mxu0 %v678
        %1148 = vmatprep.subr.mxu0 0.0
        %1149 = vmatpush1.msra.mxu0 %v679
        %1150 = vmatprep.subr.mxu0 0.0
        %1151 = vmatpush1.msra.mxu0 %v680
        %1152 = vmatprep.subr.mxu0 0.0
        %1153 = vmatpush1.msra.mxu0 %v681
        %1154 = vmatprep.subr.mxu0 0.0
        %1155 = vmatpush1.msra.mxu0 0.0
        %1156 = vmatprep.subr.mxu0 0.0
        %1157 = vmatpush1.msra.mxu0 0.0
        %1158 = vmatprep.subr.mxu0 0.0
        %1159 = vmatpush1.msra.mxu0 0.0
        %1160 = vmatprep.subr.mxu0 0.0
        %1161 = vmatpush1.msra.mxu0 0.0
        %1162 = vmatprep.subr.mxu0 0.0
        %1163 = vmatpush1.msra.mxu0 0.0
        %1164 = vmatprep.subr.mxu0 0.0
        %1165 = vmatpush1.msra.mxu0 0.0
        %1166 = vmatprep.subr.mxu0 0.0
        %1167 = vmatpush1.msra.mxu0 0.0
        %1168 = vmatprep.subr.mxu0 0.0
        %1169 = vmatpush1.msra.mxu0 0.0
        %1170 = vmatprep.subr.mxu0 0.0
        %1171 = vmatpush1.msra.mxu0 0.0
        %1172 = vmatprep.subr.mxu0 0.0
        %1173 = vmatpush1.msra.mxu0 0.0
        %1174 = vmatprep.subr.mxu0 0.0
        %1175 = vmatpush1.msra.mxu0 0.0
        %1176 = vmatprep.subr.mxu0 0.0
        %1177 = vmatpush1.msra.mxu0 0.0
        %1178 = vmatprep.subr.mxu0 0.0
        %1179 = vmatpush1.msra.mxu0 0.0
        %1180 = vmatprep.subr.mxu0 0.0
        %1181 = vmatpush1.msra.mxu0 0.0
        %1182 = vmatprep.subr.mxu0 0.0
        %1183 = vmatpush1.msra.mxu0 0.0
        %1184 = vmatprep.subr.mxu0 0.0
        %1185 = vmatpush1.msra.mxu0 0.0
        %1186 = vmatprep.subr.mxu0 0.0
        %1187 = vmatpush1.msra.mxu0 0.0
        %1188 = vmatprep.subr.mxu0 0.0
        %1189 = vmatpush1.msra.mxu0 0.0
        %1190 = vmatprep.subr.mxu0 0.0
        %1191 = vmatpush1.msra.mxu0 0.0
        %1192 = vmatprep.subr.mxu0 0.0
        %1193 = vmatpush1.msra.mxu0 0.0
        %1194 = vmatprep.subr.mxu0 0.0
        %1195 = vmatpush1.msra.mxu0 0.0
        %1196 = vmatprep.subr.mxu0 0.0
        %1197 = vmatpush1.msra.mxu0 0.0
        %1198 = vmatprep.subr.mxu0 0.0
        %1199 = vmatpush1.msra.mxu0 0.0
        %1200 = vmatprep.subr.mxu0 0.0
        %1201 = vmatpush1.msra.mxu0 0.0
        %1202 = vmatprep.subr.mxu0 0.0
        %1203 = vmatpush1.msra.mxu0 0.0
        %1204 = vmatprep.subr.mxu0 0.0
        %1205 = vmatpush1.msra.mxu0 0.0
        %1206 = vmatprep.subr.mxu0 0.0
        %1207 = vmatpush1.msra.mxu0 0.0
        %1208 = vmatprep.subr.mxu0 0.0
        %1209 = vmatpush1.msra.mxu0 0.0
        %1210 = vmatprep.mubr.f32.mxu0 0.0
        %1211 = vmatmul.mubr.f32.gmra.mrb[0].mxu0 %v1144
        %v1212 = vpop.f32.mrb[0].mxu0
        %v1213 = vadd.f32 0.0, %v1212
        %v1214 = vpop.f32.mrb[0].mxu0
        %1215 = vdwg.mxu0
        %v1216 = vadd.f32 %v1140, %v1213
        %v1217 = vxor.u32 %v1216, 2147483648
        %v1218 = vmul.f32 %v1217, 1.442695
        %v1219 = vpow.pop %v1218
        %v1220 = vadd.f32 %v1219, 1.0
        %v1221 = vrcp.pop %v1220
        %v1222 = vmul.f32 1.0, %v1221
        %v1223 = vadd.f32 %v1213, %v773
        %1225 = vrot.lane.b32.xlu0 %v1223, 64
        %v1226 = vpop.permute.xlu0 %1225
        %v1228 = vmul.f32 %v1222, %v1226
        %1230 = vrot.lane.b32.xlu0 %v1228, 64
        %v1231 = vpop.permute.xlu0 %1230
        %v1233 = vadd.f32 %v1140, %v1231
        %v1234 = vtanh.pop %v1233
        %v1235 = vsub.f32 1.0, %v1222
        %1237 = vrot.lane.b32.xlu0 %v1234, 96
        %v1238 = vpop.permute.xlu0 %1237
        %v1240 = vmul.f32 %v1235, %v1238
        %v1241 = vmul.f32 %v1222, %v1131
        %v1242 = vadd.f32 %v1240, %v1241
        // Predicated region
        $region151: #{tpu_custom_call.1} parent=27 // pred_check
          %p1243 = pneg %p798
        $region152: #{tpu_custom_call.1} parent=27 // pred_check_branch
          %1245 = sbr.rel (%p1243) target = $region154
        $region153: #{tpu_custom_call.1} parent=27 // pred_region
          %1247 = vrot.lane.b32.xlu0 %v1242, 96
          %v1248 = vpop.permute.xlu0 %1247
          %1250 = vst.msk [vmem:[#allocation2 + $0x20] sm:$0xff] %vm691, %v1248
        $region154: #{tpu_custom_call.1} parent=27 // pred_fallthru
          _
        %v1251 = vld [vmem:[#allocation3 + $0x28] sm:$0xff]
        %1253 = vrot.lane.b32.xlu0 %v1242, 96
        %v1254 = vpop.permute.xlu0 %1253
        %v1255 = vsel %vm691, %v1254, 0
        %1257 = vmatprep.subr.mxu0 0.0
        %1258 = vmatpush1.msra.mxu0 %v678
        %1259 = vmatprep.subr.mxu0 0.0
        %1260 = vmatpush1.msra.mxu0 %v679
        %1261 = vmatprep.subr.mxu0 0.0
        %1262 = vmatpush1.msra.mxu0 %v680
        %1263 = vmatprep.subr.mxu0 0.0
        %1264 = vmatpush1.msra.mxu0 %v681
        %1265 = vmatprep.subr.mxu0 0.0
        %1266 = vmatpush1.msra.mxu0 0.0
        %1267 = vmatprep.subr.mxu0 0.0
        %1268 = vmatpush1.msra.mxu0 0.0
        %1269 = vmatprep.subr.mxu0 0.0
        %1270 = vmatpush1.msra.mxu0 0.0
        %1271 = vmatprep.subr.mxu0 0.0
        %1272 = vmatpush1.msra.mxu0 0.0
        %1273 = vmatprep.subr.mxu0 0.0
        %1274 = vmatpush1.msra.mxu0 0.0
        %1275 = vmatprep.subr.mxu0 0.0
        %1276 = vmatpush1.msra.mxu0 0.0
        %1277 = vmatprep.subr.mxu0 0.0
        %1278 = vmatpush1.msra.mxu0 0.0
        %1279 = vmatprep.subr.mxu0 0.0
        %1280 = vmatpush1.msra.mxu0 0.0
        %1281 = vmatprep.subr.mxu0 0.0
        %1282 = vmatpush1.msra.mxu0 0.0
        %1283 = vmatprep.subr.mxu0 0.0
        %1284 = vmatpush1.msra.mxu0 0.0
        %1285 = vmatprep.subr.mxu0 0.0
        %1286 = vmatpush1.msra.mxu0 0.0
        %1287 = vmatprep.subr.mxu0 0.0
        %1288 = vmatpush1.msra.mxu0 0.0
        %1289 = vmatprep.subr.mxu0 0.0
        %1290 = vmatpush1.msra.mxu0 0.0
        %1291 = vmatprep.subr.mxu0 0.0
        %1292 = vmatpush1.msra.mxu0 0.0
        %1293 = vmatprep.subr.mxu0 0.0
        %1294 = vmatpush1.msra.mxu0 0.0
        %1295 = vmatprep.subr.mxu0 0.0
        %1296 = vmatpush1.msra.mxu0 0.0
        %1297 = vmatprep.subr.mxu0 0.0
        %1298 = vmatpush1.msra.mxu0 0.0
        %1299 = vmatprep.subr.mxu0 0.0
        %1300 = vmatpush1.msra.mxu0 0.0
        %1301 = vmatprep.subr.mxu0 0.0
        %1302 = vmatpush1.msra.mxu0 0.0
        %1303 = vmatprep.subr.mxu0 0.0
        %1304 = vmatpush1.msra.mxu0 0.0
        %1305 = vmatprep.subr.mxu0 0.0
        %1306 = vmatpush1.msra.mxu0 0.0
        %1307 = vmatprep.subr.mxu0 0.0
        %1308 = vmatpush1.msra.mxu0 0.0
        %1309 = vmatprep.subr.mxu0 0.0
        %1310 = vmatpush1.msra.mxu0 0.0
        %1311 = vmatprep.subr.mxu0 0.0
        %1312 = vmatpush1.msra.mxu0 0.0
        %1313 = vmatprep.subr.mxu0 0.0
        %1314 = vmatpush1.msra.mxu0 0.0
        %1315 = vmatprep.subr.mxu0 0.0
        %1316 = vmatpush1.msra.mxu0 0.0
        %1317 = vmatprep.subr.mxu0 0.0
        %1318 = vmatpush1.msra.mxu0 0.0
        %1319 = vmatprep.subr.mxu0 0.0
        %1320 = vmatpush1.msra.mxu0 0.0
        %1321 = vmatprep.mubr.f32.mxu0 0.0
        %1322 = vmatmul.mubr.f32.gmra.mrb[0].mxu0 %v1255
        %v1323 = vpop.f32.mrb[0].mxu0
        %v1324 = vadd.f32 0.0, %v1323
        %v1325 = vpop.f32.mrb[0].mxu0
        %1326 = vdwg.mxu0
        %v1327 = vadd.f32 %v1251, %v1324
        %v1328 = vxor.u32 %v1327, 2147483648
        %v1329 = vmul.f32 %v1328, 1.442695
        %v1330 = vpow.pop %v1329
        %v1331 = vadd.f32 %v1330, 1.0
        %v1332 = vrcp.pop %v1331
        %v1333 = vmul.f32 1.0, %v1332
        %v1334 = vadd.f32 %v1324, %v773
        %1336 = vrot.lane.b32.xlu0 %v1334, 64
        %v1337 = vpop.permute.xlu0 %1336
        %v1339 = vmul.f32 %v1333, %v1337
        %1341 = vrot.lane.b32.xlu0 %v1339, 64
        %v1342 = vpop.permute.xlu0 %1341
        %v1344 = vadd.f32 %v1251, %v1342
        %v1345 = vtanh.pop %v1344
        %v1346 = vsub.f32 1.0, %v1333
        %1348 = vrot.lane.b32.xlu0 %v1345, 96
        %v1349 = vpop.permute.xlu0 %1348
        %v1351 = vmul.f32 %v1346, %v1349
        %v1352 = vmul.f32 %v1333, %v1242
        %v1353 = vadd.f32 %v1351, %v1352
        // Predicated region
        $region155: #{tpu_custom_call.1} parent=27 // pred_check
          %p1354 = pneg %p798
        $region156: #{tpu_custom_call.1} parent=27 // pred_check_branch
          %1356 = sbr.rel (%p1354) target = $region158
        $region157: #{tpu_custom_call.1} parent=27 // pred_region
          %1358 = vrot.lane.b32.xlu0 %v1353, 96
          %v1359 = vpop.permute.xlu0 %1358
          %1361 = vst.msk [vmem:[#allocation2 + $0x28] sm:$0xff] %vm691, %v1359
        $region158: #{tpu_custom_call.1} parent=27 // pred_fallthru
          _
        %v1362 = vld [vmem:[#allocation3 + $0x30] sm:$0xff]
        %1364 = vrot.lane.b32.xlu0 %v1353, 96
        %v1365 = vpop.permute.xlu0 %1364
        %v1366 = vsel %vm691, %v1365, 0
        %1368 = vmatprep.subr.mxu0 0.0
        %1369 = vmatpush1.msra.mxu0 %v678
        %1370 = vmatprep.subr.mxu0 0.0
        %1371 = vmatpush1.msra.mxu0 %v679
        %1372 = vmatprep.subr.mxu0 0.0
        %1373 = vmatpush1.msra.mxu0 %v680
        %1374 = vmatprep.subr.mxu0 0.0
        %1375 = vmatpush1.msra.mxu0 %v681
        %1376 = vmatprep.subr.mxu0 0.0
        %1377 = vmatpush1.msra.mxu0 0.0
        %1378 = vmatprep.subr.mxu0 0.0
        %1379 = vmatpush1.msra.mxu0 0.0
        %1380 = vmatprep.subr.mxu0 0.0
        %1381 = vmatpush1.msra.mxu0 0.0
        %1382 = vmatprep.subr.mxu0 0.0
        %1383 = vmatpush1.msra.mxu0 0.0
        %1384 = vmatprep.subr.mxu0 0.0
        %1385 = vmatpush1.msra.mxu0 0.0
        %1386 = vmatprep.subr.mxu0 0.0
        %1387 = vmatpush1.msra.mxu0 0.0
        %1388 = vmatprep.subr.mxu0 0.0
        %1389 = vmatpush1.msra.mxu0 0.0
        %1390 = vmatprep.subr.mxu0 0.0
        %1391 = vmatpush1.msra.mxu0 0.0
        %1392 = vmatprep.subr.mxu0 0.0
        %1393 = vmatpush1.msra.mxu0 0.0
        %1394 = vmatprep.subr.mxu0 0.0
        %1395 = vmatpush1.msra.mxu0 0.0
        %1396 = vmatprep.subr.mxu0 0.0
        %1397 = vmatpush1.msra.mxu0 0.0
        %1398 = vmatprep.subr.mxu0 0.0
        %1399 = vmatpush1.msra.mxu0 0.0
        %1400 = vmatprep.subr.mxu0 0.0
        %1401 = vmatpush1.msra.mxu0 0.0
        %1402 = vmatprep.subr.mxu0 0.0
        %1403 = vmatpush1.msra.mxu0 0.0
        %1404 = vmatprep.subr.mxu0 0.0
        %1405 = vmatpush1.msra.mxu0 0.0
        %1406 = vmatprep.subr.mxu0 0.0
        %1407 = vmatpush1.msra.mxu0 0.0
        %1408 = vmatprep.subr.mxu0 0.0
        %1409 = vmatpush1.msra.mxu0 0.0
        %1410 = vmatprep.subr.mxu0 0.0
        %1411 = vmatpush1.msra.mxu0 0.0
        %1412 = vmatprep.subr.mxu0 0.0
        %1413 = vmatpush1.msra.mxu0 0.0
        %1414 = vmatprep.subr.mxu0 0.0
        %1415 = vmatpush1.msra.mxu0 0.0
        %1416 = vmatprep.subr.mxu0 0.0
        %1417 = vmatpush1.msra.mxu0 0.0
        %1418 = vmatprep.subr.mxu0 0.0
        %1419 = vmatpush1.msra.mxu0 0.0
        %1420 = vmatprep.subr.mxu0 0.0
        %1421 = vmatpush1.msra.mxu0 0.0
        %1422 = vmatprep.subr.mxu0 0.0
        %1423 = vmatpush1.msra.mxu0 0.0
        %1424 = vmatprep.subr.mxu0 0.0
        %1425 = vmatpush1.msra.mxu0 0.0
        %1426 = vmatprep.subr.mxu0 0.0
        %1427 = vmatpush1.msra.mxu0 0.0
        %1428 = vmatprep.subr.mxu0 0.0
        %1429 = vmatpush1.msra.mxu0 0.0
        %1430 = vmatprep.subr.mxu0 0.0
        %1431 = vmatpush1.msra.mxu0 0.0
        %1432 = vmatprep.mubr.f32.mxu0 0.0
        %1433 = vmatmul.mubr.f32.gmra.mrb[0].mxu0 %v1366
        %v1434 = vpop.f32.mrb[0].mxu0
        %v1435 = vadd.f32 0.0, %v1434
        %v1436 = vpop.f32.mrb[0].mxu0
        %1437 = vdwg.mxu0
        %v1438 = vadd.f32 %v1362, %v1435
        %v1439 = vxor.u32 %v1438, 2147483648
        %v1440 = vmul.f32 %v1439, 1.442695
        %v1441 = vpow.pop %v1440
        %v1442 = vadd.f32 %v1441, 1.0
        %v1443 = vrcp.pop %v1442
        %v1444 = vmul.f32 1.0, %v1443
        %v1445 = vadd.f32 %v1435, %v773
        %1447 = vrot.lane.b32.xlu0 %v1445, 64
        %v1448 = vpop.permute.xlu0 %1447
        %v1450 = vmul.f32 %v1444, %v1448
        %1452 = vrot.lane.b32.xlu0 %v1450, 64
        %v1453 = vpop.permute.xlu0 %1452
        %v1455 = vadd.f32 %v1362, %v1453
        %v1456 = vtanh.pop %v1455
        %v1457 = vsub.f32 1.0, %v1444
        %1459 = vrot.lane.b32.xlu0 %v1456, 96
        %v1460 = vpop.permute.xlu0 %1459
        %v1462 = vmul.f32 %v1457, %v1460
        %v1463 = vmul.f32 %v1444, %v1353
        %v1464 = vadd.f32 %v1462, %v1463
        // Predicated region
        $region159: #{tpu_custom_call.1} parent=27 // pred_check
          %p1465 = pneg %p798
        $region160: #{tpu_custom_call.1} parent=27 // pred_check_branch
          %1467 = sbr.rel (%p1465) target = $region162
        $region161: #{tpu_custom_call.1} parent=27 // pred_region
          %1469 = vrot.lane.b32.xlu0 %v1464, 96
          %v1470 = vpop.permute.xlu0 %1469
          %1472 = vst.msk [vmem:[#allocation2 + $0x30] sm:$0xff] %vm691, %v1470
        $region162: #{tpu_custom_call.1} parent=27 // pred_fallthru
          _
        %v1473 = vld [vmem:[#allocation3 + $0x38] sm:$0xff]
        %1475 = vrot.lane.b32.xlu0 %v1464, 96
        %v1476 = vpop.permute.xlu0 %1475
        %v1477 = vsel %vm691, %v1476, 0
        %1479 = vmatprep.subr.mxu0 0.0
        %1480 = vmatpush1.msra.mxu0 %v678
        %1481 = vmatprep.subr.mxu0 0.0
        %1482 = vmatpush1.msra.mxu0 %v679
        %1483 = vmatprep.subr.mxu0 0.0
        %1484 = vmatpush1.msra.mxu0 %v680
        %1485 = vmatprep.subr.mxu0 0.0
        %1486 = vmatpush1.msra.mxu0 %v681
        %1487 = vmatprep.subr.mxu0 0.0
        %1488 = vmatpush1.msra.mxu0 0.0
        %1489 = vmatprep.subr.mxu0 0.0
        %1490 = vmatpush1.msra.mxu0 0.0
        %1491 = vmatprep.subr.mxu0 0.0
        %1492 = vmatpush1.msra.mxu0 0.0
        %1493 = vmatprep.subr.mxu0 0.0
        %1494 = vmatpush1.msra.mxu0 0.0
        %1495 = vmatprep.subr.mxu0 0.0
        %1496 = vmatpush1.msra.mxu0 0.0
        %1497 = vmatprep.subr.mxu0 0.0
        %1498 = vmatpush1.msra.mxu0 0.0
        %1499 = vmatprep.subr.mxu0 0.0
        %1500 = vmatpush1.msra.mxu0 0.0
        %1501 = vmatprep.subr.mxu0 0.0
        %1502 = vmatpush1.msra.mxu0 0.0
        %1503 = vmatprep.subr.mxu0 0.0
        %1504 = vmatpush1.msra.mxu0 0.0
        %1505 = vmatprep.subr.mxu0 0.0
        %1506 = vmatpush1.msra.mxu0 0.0
        %1507 = vmatprep.subr.mxu0 0.0
        %1508 = vmatpush1.msra.mxu0 0.0
        %1509 = vmatprep.subr.mxu0 0.0
        %1510 = vmatpush1.msra.mxu0 0.0
        %1511 = vmatprep.subr.mxu0 0.0
        %1512 = vmatpush1.msra.mxu0 0.0
        %1513 = vmatprep.subr.mxu0 0.0
        %1514 = vmatpush1.msra.mxu0 0.0
        %1515 = vmatprep.subr.mxu0 0.0
        %1516 = vmatpush1.msra.mxu0 0.0
        %1517 = vmatprep.subr.mxu0 0.0
        %1518 = vmatpush1.msra.mxu0 0.0
        %1519 = vmatprep.subr.mxu0 0.0
        %1520 = vmatpush1.msra.mxu0 0.0
        %1521 = vmatprep.subr.mxu0 0.0
        %1522 = vmatpush1.msra.mxu0 0.0
        %1523 = vmatprep.subr.mxu0 0.0
        %1524 = vmatpush1.msra.mxu0 0.0
        %1525 = vmatprep.subr.mxu0 0.0
        %1526 = vmatpush1.msra.mxu0 0.0
        %1527 = vmatprep.subr.mxu0 0.0
        %1528 = vmatpush1.msra.mxu0 0.0
        %1529 = vmatprep.subr.mxu0 0.0
        %1530 = vmatpush1.msra.mxu0 0.0
        %1531 = vmatprep.subr.mxu0 0.0
        %1532 = vmatpush1.msra.mxu0 0.0
        %1533 = vmatprep.subr.mxu0 0.0
        %1534 = vmatpush1.msra.mxu0 0.0
        %1535 = vmatprep.subr.mxu0 0.0
        %1536 = vmatpush1.msra.mxu0 0.0
        %1537 = vmatprep.subr.mxu0 0.0
        %1538 = vmatpush1.msra.mxu0 0.0
        %1539 = vmatprep.subr.mxu0 0.0
        %1540 = vmatpush1.msra.mxu0 0.0
        %1541 = vmatprep.subr.mxu0 0.0
        %1542 = vmatpush1.msra.mxu0 0.0
        %1543 = vmatprep.mubr.f32.mxu0 0.0
        %1544 = vmatmul.mubr.f32.gmra.mrb[0].mxu0 %v1477
        %v1545 = vpop.f32.mrb[0].mxu0
        %v1546 = vadd.f32 0.0, %v1545
        %v1547 = vpop.f32.mrb[0].mxu0
        %1548 = vdwg.mxu0
        %v1549 = vadd.f32 %v1473, %v1546
        %v1550 = vxor.u32 %v1549, 2147483648
        %v1551 = vmul.f32 %v1550, 1.442695
        %v1552 = vpow.pop %v1551
        %v1553 = vadd.f32 %v1552, 1.0
        %v1554 = vrcp.pop %v1553
        %v1555 = vmul.f32 1.0, %v1554
        %v1556 = vadd.f32 %v1546, %v773
        %1558 = vrot.lane.b32.xlu0 %v1556, 64
        %v1559 = vpop.permute.xlu0 %1558
        %v1561 = vmul.f32 %v1555, %v1559
        %1563 = vrot.lane.b32.xlu0 %v1561, 64
        %v1564 = vpop.permute.xlu0 %1563
        %v1566 = vadd.f32 %v1473, %v1564
        %v1567 = vtanh.pop %v1566
        %v1568 = vsub.f32 1.0, %v1555
        %1570 = vrot.lane.b32.xlu0 %v1567, 96
        %v1571 = vpop.permute.xlu0 %1570
        %v1573 = vmul.f32 %v1568, %v1571
        %v1574 = vmul.f32 %v1555, %v1464
        %v1575 = vadd.f32 %v1573, %v1574
        // Predicated region
        $region163: #{tpu_custom_call.1} parent=27 // pred_check
          %p1576 = pneg %p798
        $region164: #{tpu_custom_call.1} parent=27 // pred_check_branch
          %1578 = sbr.rel (%p1576) target = $region166
        $region165: #{tpu_custom_call.1} parent=27 // pred_region
          %1580 = vrot.lane.b32.xlu0 %v1575, 96
          %v1581 = vpop.permute.xlu0 %1580
          %1583 = vst.msk [vmem:[#allocation2 + $0x38] sm:$0xff] %vm691, %v1581
        $region166: #{tpu_custom_call.1} parent=27 // pred_fallthru
          _
        // Predicated region
        $region167: #{tpu_custom_call.1} parent=27 // pred_check
          %p1584 = pneg %p179
        $region168: #{tpu_custom_call.1} parent=27 // pred_check_branch
          %1586 = sbr.rel (%p1584) target = $region170
        $region169: #{tpu_custom_call.1} parent=27 // pred_region
          %1588 = vrot.lane.b32.xlu0 %v1575, 96
          %v1589 = vpop.permute.xlu0 %1588
          %1591 = vst.msk [vmem:[#allocation4] sm:$0xff] %vm691, %v1589
        $region170: #{tpu_custom_call.1} parent=27 // pred_fallthru
          _
        // Predicated region
        $region171: #{tpu_custom_call.1} parent=27 // pred_check
          %p1592 = pneg %p511
        $region172: #{tpu_custom_call.1} parent=27 // pred_check_branch
          %1594 = sbr.rel (%p1592) target = $region174
        $region173: #{tpu_custom_call.1} parent=27 // pred_region
          %v1595 = vld [vmem:[#allocation4] sm:$0xff]
          %1597 = vrot.lane.b32.xlu0 %v1575, 96
          %v1598 = vpop.permute.xlu0 %1597
          %v1600 = vadd.f32 %v1595, %v1598
          %1601 = vst.msk [vmem:[#allocation4] sm:$0xff] %vm691, %v1600
        $region174: #{tpu_custom_call.1} parent=27 // pred_fallthru
          _
        %p1602 = scmp.eq.s32.totalorder %s23, 1
        // Predicated region
        $region175: #{tpu_custom_call.1} parent=27 // pred_check
          %p1603 = pneg %p1602
        $region176: #{tpu_custom_call.1} parent=27 // pred_check_branch
          %1605 = sbr.rel (%p1603) target = $region178
        $region177: #{tpu_custom_call.1} parent=27 // pred_region
          %v1606 = vld [vmem:[#allocation4] sm:$0xff]
          %v1607 = vmul.f32 %v1606, 0.5
          %1608 = vst.msk [vmem:[#allocation10] sm:$0xff] %vm691, %v1607
        $region178: #{tpu_custom_call.1} parent=27 // pred_fallthru
          _
        // Predicated region
        $region179: #{tpu_custom_call.1} parent=27 // pred_check
          %p1609 = pneg %p102
        $region180: #{tpu_custom_call.1} parent=27 // pred_check_branch
          %1611 = sbr.rel (%p1609) target = $region182
        $region181: #{tpu_custom_call.1} parent=27 // pred_region
          %s1613 = ssub.s32 128, 128
          %1614 = vsyncadd [#allocation11], %s1613
          %s1615 = smul.addr %s22, 128
          %s1616 = scalar_lea.hbm %s6, %s1615
          %s1618 = sshll.u32 [#allocation10], 4
          %s1619 = int_to_ptr.vmem [resolvable:$true] %s1618
          %1621 = dma.vmem_to_hbm [thread:$0]  %s1619, 128, %s1616, [#allocation11]
        $region182: #{tpu_custom_call.1} parent=27 // pred_fallthru
          _
        // Predicated region
        $region183: #{tpu_custom_call.1} parent=27 // pred_check
          %p1622 = pneg %p102
        $region184: #{tpu_custom_call.1} parent=27 // pred_check_branch
          %1624 = sbr.rel (%p1622) target = $region186
        $region185: #{tpu_custom_call.1} parent=27 // pred_region
          %1625 = dma.done [#allocation11], 128
        $region186: #{tpu_custom_call.1} parent=27 // pred_fallthru
          _
      $region28: #{tpu_custom_call.1} parent=5 // pred_fallthru
        _
      %p1626 = scmp.le.s32.totalorder 2, %s13
      // Predicated region
      $region187: #{tpu_custom_call.1} parent=5 // pred_check
        %p1627 = pneg %p1626
      $region188: #{tpu_custom_call.1} parent=5 // pred_check_branch
        %1629 = sbr.rel (%p1627) target = $region190
      $region189: #{tpu_custom_call.1} parent=5 // pred_region
        %s1630 = ssub.s32 %s13, 2
      $region190: #{tpu_custom_call.1} parent=5 // pred_fallthru
        _
    $region6: #{tpu_custom_call.1} parent=1 // loop_footer
      %s17 = sadd.s32 1, %s13
    $region7: #{tpu_custom_call.1} parent=1 // loop_footer_branch
      %12 = sbr.rel target = $region3
    $region8: #{tpu_custom_call.1} parent=1 // loop_exit
      _
    %1631 = vsyncpa [#allocation11], 1
    %s1632 = scalar_lea.sflag [#allocation11], 1
    %1633 = vsyncpa %s1632, 1
  %1634 = vsyncmov [#allocation9]
  %s1635 = vpop.sfrf %1634
  %p1636 = scmp.eq.s32.totalorder %s1635, 0
  %p1637 = pneg %p1636
  %1639 = shalt.err (%p1637)
  %s1640 = scalar_lea.sflag [#allocation9], 1
  %1641 = vsyncmov %s1640
  %s1642 = vpop.sfrf %1641
  %p1643 = scmp.eq.s32.totalorder %s1642, 0
  %p1644 = pneg %p1643
  %1646 = shalt.err (%p1644)
  %s1647 = scalar_lea.sflag [#allocation9], 2
  %1648 = vsyncmov %s1647
  %s1649 = vpop.sfrf %1648
  %p1650 = scmp.eq.s32.totalorder %s1649, 0
  %p1651 = pneg %p1650
  %1653 = shalt.err (%p1651)
  %s1654 = scalar_lea.sflag [#allocation9], 3
  %1655 = vsyncmov %s1654
  %s1656 = vpop.sfrf %1655
  %p1657 = scmp.eq.s32.totalorder %s1656, 0
  %p1658 = pneg %p1657
  %1660 = shalt.err (%p1658)

</llo_original>
